<compile_context>
chip_gen: v7x
topology: tpu7x:2x2x1
jax: 0.10.0
libtpu: 0.0.40
codegen_flags: <defaults>
</compile_context>

<pallas_src>
import functools

import jax
import jax.numpy as jnp
from jax import lax
from jax.experimental import pallas as pl
from jax.experimental.pallas import tpu as pltpu

LANE = 128      # vreg lane width (last dim)
SUBLANE = 8     # vreg sublane width (second-last dim)


def _round_up(v, m):
    return (v + m - 1) // m * m


# ----------------------------------------------------------------------------
# Fused kernel: phase 0 = SiLU(fc1) + batch stats, phase 1 = BN + fc3 + softmax
# ----------------------------------------------------------------------------
def fused_kernel(x_ref, w1_ref, b1_ref, gamma_ref, beta_ref, w3_ref, b3_ref,
                 o_ref, sum_sc, ssq_sc, scale_sc, shift_sc, *, inv_n, eps):
    p = pl.program_id(0)          # 0 = statistics pass, 1 = output pass
    i = pl.program_id(1)          # batch tile

    # fc1 + SiLU, recomputed in both phases (cheaper than an HBM h round trip).
    # MXU operands may be bf16 (wrapper choice); accumulation + epilogue f32.
    xb = x_ref[...].astype(w1_ref.dtype)
    h = jnp.dot(xb, w1_ref[...], preferred_element_type=jnp.float32) + b1_ref[...]
    # SiLU: h * sigmoid(h); sigmoid(h) = 0.5*(1 + tanh(h/2)) -> EUP slot,
    # NaN-free for large |h| (unlike 1/(1+exp(-h))).
    h = h * (0.5 * (jnp.tanh(0.5 * h) + 1.0))

    # ---- phase 0: accumulate batch statistics (sublane partials) -----------
    @pl.when((p == 0) & (i == 0))
    def _():
        sum_sc[...] = jnp.zeros_like(sum_sc)
        ssq_sc[...] = jnp.zeros_like(ssq_sc)

    @pl.when(p == 0)
    def _():
        # Reduce only over the leading (vreg-count) axis here (VPU adds);
        # the single cross-sublane XLU reduce happens once in the BN fold.
        hp = h.reshape(h.shape[0] // SUBLANE, SUBLANE, h.shape[1])
        sum_sc[...] += jnp.sum(hp, axis=0)
        ssq_sc[...] += jnp.sum(hp * hp, axis=0)

    # ---- phase 1: fold BN (training-mode, biased variance) once ------------
    @pl.when((p == 1) & (i == 0))
    def _():
        mean = jnp.sum(sum_sc[...], axis=0, keepdims=True) * inv_n
        ex2 = jnp.sum(ssq_sc[...], axis=0, keepdims=True) * inv_n
        # One-pass variance; clamp guards f32 cancellation.
        # TODO(synk): true two-pass variance if activations ever get large.
        var = jnp.maximum(ex2 - mean * mean, 0.0)
        rstd = lax.rsqrt(var + eps)
        scale_sc[...] = gamma_ref[...] * rstd
        shift_sc[...] = beta_ref[...] - mean * gamma_ref[...] * rstd

    # ---- phase 1: BN apply + fc3 + softmax ----------------------------------
    @pl.when(p == 1)
    def _():
        hb = h * scale_sc[...] + shift_sc[...]
        logits = jnp.dot(hb.astype(w3_ref.dtype), w3_ref[...],
                         preferred_element_type=jnp.float32) + b3_ref[...]
        m = jnp.max(logits, axis=1, keepdims=True)
        e = jnp.exp(logits - m)
        # Exact divide so softmax rows sum to 1 within f32 rounding.
        o_ref[...] = e / jnp.sum(e, axis=1, keepdims=True)


@functools.partial(jax.jit, static_argnames=("tile_n", "eps", "use_bf16"))
def net_forward(x, w1, b1, gamma, beta, w3, b3, *,
                tile_n=256, eps=1e-5, use_bf16=True):
    n, x_size = x.shape
    k = w1.shape[1]
    t_size = w3.shape[1]

    tile_n = min(tile_n, n)
    assert n % tile_n == 0, "N must be a multiple of the batch tile"
    assert tile_n % SUBLANE == 0, "batch tile must be a multiple of 8 sublanes"

    # Pad only the hidden (weight-side) dim to 128 lanes; x stays unpadded.
    kp = _round_up(k, LANE)
    mx_dtype = jnp.bfloat16 if use_bf16 else jnp.float32

    w1p = jnp.pad(w1, ((0, 0), (0, kp - k))).astype(mx_dtype)
    b1p = jnp.pad(b1.reshape(1, k), ((0, 0), (0, kp - k)))
    gammap = jnp.pad(gamma.reshape(1, k), ((0, 0), (0, kp - k)))
    betap = jnp.pad(beta.reshape(1, k), ((0, 0), (0, kp - k)))
    w3p = jnp.pad(w3, ((0, kp - k), (0, 0))).astype(mx_dtype)
    b3r = b3.reshape(1, t_size)

    num_tiles = n // tile_n
    grid = (2, num_tiles)
    resident = lambda p, i: (0, 0)   # weights / biases stay loaded once

    kernel = functools.partial(fused_kernel, inv_n=1.0 / n, eps=eps)

    return pl.pallas_call(
        kernel,
        out_shape=jax.ShapeDtypeStruct((n, t_size), jnp.float32),
        grid_spec=pltpu.PrefetchScalarGridSpec(
            num_scalar_prefetch=0,
            grid=grid,
            in_specs=[pl.BlockSpec((tile_n, x_size), lambda p, i: (i, 0)),
                      pl.BlockSpec((x_size, kp), resident),
                      pl.BlockSpec((1, kp), resident),
                      pl.BlockSpec((1, kp), resident),
                      pl.BlockSpec((1, kp), resident),
                      pl.BlockSpec((kp, t_size), resident),
                      pl.BlockSpec((1, t_size), resident)],
            # p*i -> the output block stays at 0 during phase 0 (never written,
            # never flushed), then follows the batch tile in phase 1.
            out_specs=pl.BlockSpec((tile_n, t_size), lambda p, i: (p * i, 0)),
            scratch_shapes=[pltpu.VMEM((SUBLANE, kp), jnp.float32),   # sum
                            pltpu.VMEM((SUBLANE, kp), jnp.float32),   # sum sq
                            pltpu.VMEM((1, kp), jnp.float32),         # scale
                            pltpu.VMEM((1, kp), jnp.float32)]),       # shift
        compiler_params=pltpu.CompilerParams(
            dimension_semantics=("arbitrary", "arbitrary")),
    )(x, w1p, b1p, gammap, betap, w3p, b3r)


# ----------------------------------------------------------------------------
# Pure-JAX reference for correctness checking.
# ----------------------------------------------------------------------------
def net_reference(x, w1, b1, gamma, beta, w3, b3, eps=1e-5):
    h = x @ w1 + b1.reshape(1, -1)
    h = h * jax.nn.sigmoid(h)
    mean = jnp.mean(h, axis=0, keepdims=True)
    var = jnp.mean((h - mean) ** 2, axis=0, keepdims=True)
    h = (h - mean) * lax.rsqrt(var + eps)
    h = h * gamma.reshape(1, -1) + beta.reshape(1, -1)
    logits = h @ w3 + b3.reshape(1, -1)
    return jax.nn.softmax(logits, axis=1)


def init_params(key, x_size, k, t_size):
    # Deterministic synthetic init (PyTorch-Linear-style uniform bounds).
    k1, k2, k3, k4 = jax.random.split(key, 4)
    bound1 = 1.0 / (x_size ** 0.5)
    bound3 = 1.0 / (k ** 0.5)
    w1 = jax.random.uniform(k1, (x_size, k), jnp.float32, -bound1, bound1)
    b1 = jax.random.uniform(k2, (k,), jnp.float32, -bound1, bound1)
    w3 = jax.random.uniform(k3, (k, t_size), jnp.float32, -bound3, bound3)
    b3 = jax.random.uniform(k4, (t_size,), jnp.float32, -bound3, bound3)
    gamma = jnp.ones((k,), jnp.float32)    # BatchNorm1d default weight
    beta = jnp.zeros((k,), jnp.float32)    # BatchNorm1d default bias
    return w1, b1, gamma, beta, w3, b3


if __name__ == "__main__":
    # Shapes consistent with the module: x_size=16 input features, hidden
    # k=100, t_size=8 output classes.  N=512 with tile_n=256 -> two batch
    # tiles, so the 2-phase grid and resident-weight pipelining are exercised.
    N, X_SIZE, K, T_SIZE, TILE_N = 512, 16, 100, 8, 256

    key = jax.random.PRNGKey(0)
    kx, kparam = jax.random.split(key)
    x = jax.random.normal(kx, (N, X_SIZE), jnp.float32)
    params = init_params(kparam, X_SIZE, K, T_SIZE)
    ref = net_reference(x, *params)

    # Exact-f32 MXU path: tight check against the pure-JAX reference.
    out_f32 = jax.block_until_ready(
        net_forward(x, *params, tile_n=TILE_N, use_bf16=False))
    assert out_f32.shape == (N, T_SIZE)
    assert bool(jnp.allclose(jnp.sum(out_f32, axis=1), 1.0, atol=1e-5))
    assert bool(jnp.allclose(out_f32, ref, atol=2e-4, rtol=2e-3))

    # Mixed-precision path (bf16 MXU operands, f32 epilogue): looser tolerance.
    out_bf16 = jax.block_until_ready(
        net_forward(x, *params, tile_n=TILE_N, use_bf16=True))
    assert out_bf16.shape == (N, T_SIZE)
    assert bool(jnp.allclose(jnp.sum(out_bf16, axis=1), 1.0, atol=1e-5))
    assert bool(jnp.allclose(out_bf16, ref, atol=5e-3, rtol=2e-2))

    print("KERNEL_OK")
</pallas_src>

<mosaic_0001>
module attributes {stable_mosaic.version = 11 : i64} {
  func.func @fused_kernel(%arg0: i32, %arg1: i32, %arg2: memref<256x16xf32, #tpu.memory_space<vmem>>, %arg3: memref<16x128xf32, #tpu.memory_space<vmem>>, %arg4: memref<1x128xf32, #tpu.memory_space<vmem>>, %arg5: memref<1x128xf32, #tpu.memory_space<vmem>>, %arg6: memref<1x128xf32, #tpu.memory_space<vmem>>, %arg7: memref<128x8xf32, #tpu.memory_space<vmem>>, %arg8: memref<1x8xf32, #tpu.memory_space<vmem>>, %arg9: memref<256x8xf32, #tpu.memory_space<vmem>>, %arg10: memref<8x128xf32, #tpu.memory_space<vmem>>, %arg11: memref<8x128xf32, #tpu.memory_space<vmem>>, %arg12: memref<1x128xf32, #tpu.memory_space<vmem>>, %arg13: memref<1x128xf32, #tpu.memory_space<vmem>>) attributes {dimension_semantics = [#tpu.dimension_semantics<arbitrary>, #tpu.dimension_semantics<arbitrary>], iteration_bounds = array<i64: 2, 2>, scalar_prefetch = 0 : i64, scratch_operands = 4 : i64, tpu.core_type = #tpu.core_type<tc>, window_params = [{transform_indices = @transform_0, window_bounds = array<i64: 256, 16>}, {pipeline_mode = #tpu.pipeline_mode<synchronous>, transform_indices = @transform_1, window_bounds = array<i64: 16, 128>}, {pipeline_mode = #tpu.pipeline_mode<synchronous>, transform_indices = @transform_2, window_bounds = array<i64: 1, 128>}, {pipeline_mode = #tpu.pipeline_mode<synchronous>, transform_indices = @transform_3, window_bounds = array<i64: 1, 128>}, {pipeline_mode = #tpu.pipeline_mode<synchronous>, transform_indices = @transform_4, window_bounds = array<i64: 1, 128>}, {pipeline_mode = #tpu.pipeline_mode<synchronous>, transform_indices = @transform_5, window_bounds = array<i64: 128, 8>}, {pipeline_mode = #tpu.pipeline_mode<synchronous>, transform_indices = @transform_6, window_bounds = array<i64: 1, 8>}, {transform_indices = @transform_7, window_bounds = array<i64: 256, 8>}]} {
    %c0 = arith.constant 0 : index
    %c0_0 = arith.constant 0 : index
    %0 = vector.load %arg2[%c0, %c0_0] : memref<256x16xf32, #tpu.memory_space<vmem>>, vector<256x16xf32>
    %c0_1 = arith.constant 0 : index
    %c0_2 = arith.constant 0 : index
    %1 = vector.load %arg3[%c0_1, %c0_2] : memref<16x128xf32, #tpu.memory_space<vmem>>, vector<16x128xf32>
    %cst = arith.constant dense<0.000000e+00> : vector<256x128xf32>
    %2 = tpu.matmul %0, %1, %cst {dimension_numbers = #tpu.dot_dimension_numbers<[1], [0], [0], [1], [0, 0, 1, 1], [], []>} : vector<256x16xf32>, vector<16x128xf32>, vector<256x128xf32> -> vector<256x128xf32>
    %c0_3 = arith.constant 0 : index
    %c0_4 = arith.constant 0 : index
    %3 = vector.load %arg4[%c0_3, %c0_4] : memref<1x128xf32, #tpu.memory_space<vmem>>, vector<1x128xf32>
    %4 = vector.broadcast %3 : vector<1x128xf32> to vector<256x128xf32>
    %5 = arith.addf %2, %4 : vector<256x128xf32>
    %cst_5 = arith.constant 5.000000e-01 : f32
    %6 = vector.broadcast %cst_5 : f32 to vector<256x128xf32>
    %7 = arith.mulf %6, %5 : vector<256x128xf32>
    %8 = math.tanh %7 : vector<256x128xf32>
    %cst_6 = arith.constant 1.000000e+00 : f32
    %9 = vector.broadcast %cst_6 : f32 to vector<256x128xf32>
    %10 = arith.addf %8, %9 : vector<256x128xf32>
    %cst_7 = arith.constant 5.000000e-01 : f32
    %11 = vector.broadcast %cst_7 : f32 to vector<256x128xf32>
    %12 = arith.mulf %11, %10 : vector<256x128xf32>
    %13 = arith.mulf %5, %12 : vector<256x128xf32>
    %c0_i32 = arith.constant 0 : i32
    %14 = arith.cmpi eq, %arg0, %c0_i32 : i32
    %c0_i32_8 = arith.constant 0 : i32
    %15 = arith.cmpi eq, %arg1, %c0_i32_8 : i32
    %16 = arith.andi %14, %15 : i1
    %17 = arith.extui %16 : i1 to i32
    %c0_i32_9 = arith.constant 0 : i32
    %18 = arith.cmpi ne, %17, %c0_i32_9 : i32
    scf.if %18 {
      %cst_16 = arith.constant 0.000000e+00 : f32
      %30 = vector.broadcast %cst_16 : f32 to vector<8x128xf32>
      %c0_17 = arith.constant 0 : index
      %c0_18 = arith.constant 0 : index
      %31 = vector.load %arg10[%c0_17, %c0_18] : memref<8x128xf32, #tpu.memory_space<vmem>>, vector<8x128xf32>
      tpu.vector_store %arg10[%c0_17, %c0_18], %30 {strides = array<i32>} : memref<8x128xf32, #tpu.memory_space<vmem>>, vector<8x128xf32>,
      %cst_19 = arith.constant 0.000000e+00 : f32
      %32 = vector.broadcast %cst_19 : f32 to vector<8x128xf32>
      %c0_20 = arith.constant 0 : index
      %c0_21 = arith.constant 0 : index
      %33 = vector.load %arg11[%c0_20, %c0_21] : memref<8x128xf32, #tpu.memory_space<vmem>>, vector<8x128xf32>
      tpu.vector_store %arg11[%c0_20, %c0_21], %32 {strides = array<i32>} : memref<8x128xf32, #tpu.memory_space<vmem>>, vector<8x128xf32>,
    } else {
    }
    %c0_i32_10 = arith.constant 0 : i32
    %19 = arith.cmpi eq, %arg0, %c0_i32_10 : i32
    %20 = arith.extui %19 : i1 to i32
    %c0_i32_11 = arith.constant 0 : i32
    %21 = arith.cmpi ne, %20, %c0_i32_11 : i32
    scf.if %21 {
      %30 = vector.shape_cast %13 : vector<256x128xf32> to vector<32x8x128xf32>
      %c0_16 = arith.constant 0 : index
      %c0_17 = arith.constant 0 : index
      %31 = vector.load %arg10[%c0_16, %c0_17] : memref<8x128xf32, #tpu.memory_space<vmem>>, vector<8x128xf32>
      %cst_18 = arith.constant dense<0.000000e+00> : vector<8x128xf32>
      %32 = vector.multi_reduction <add>, %30, %cst_18 [0] : vector<32x8x128xf32> to vector<8x128xf32>
      %33 = arith.addf %31, %32 : vector<8x128xf32>
      %c0_19 = arith.constant 0 : index
      %c0_20 = arith.constant 0 : index
      %34 = vector.load %arg10[%c0_19, %c0_20] : memref<8x128xf32, #tpu.memory_space<vmem>>, vector<8x128xf32>
      tpu.vector_store %arg10[%c0_19, %c0_20], %33 {strides = array<i32>} : memref<8x128xf32, #tpu.memory_space<vmem>>, vector<8x128xf32>,
      %c0_21 = arith.constant 0 : index
      %c0_22 = arith.constant 0 : index
      %35 = vector.load %arg11[%c0_21, %c0_22] : memref<8x128xf32, #tpu.memory_space<vmem>>, vector<8x128xf32>
      %36 = arith.mulf %30, %30 : vector<32x8x128xf32>
      %cst_23 = arith.constant dense<0.000000e+00> : vector<8x128xf32>
      %37 = vector.multi_reduction <add>, %36, %cst_23 [0] : vector<32x8x128xf32> to vector<8x128xf32>
      %38 = arith.addf %35, %37 : vector<8x128xf32>
      %c0_24 = arith.constant 0 : index
      %c0_25 = arith.constant 0 : index
      %39 = vector.load %arg11[%c0_24, %c0_25] : memref<8x128xf32, #tpu.memory_space<vmem>>, vector<8x128xf32>
      tpu.vector_store %arg11[%c0_24, %c0_25], %38 {strides = array<i32>} : memref<8x128xf32, #tpu.memory_space<vmem>>, vector<8x128xf32>,
    } else {
    }
    %c1_i32 = arith.constant 1 : i32
    %22 = arith.cmpi eq, %arg0, %c1_i32 : i32
    %c0_i32_12 = arith.constant 0 : i32
    %23 = arith.cmpi eq, %arg1, %c0_i32_12 : i32
    %24 = arith.andi %22, %23 : i1
    %25 = arith.extui %24 : i1 to i32
    %c0_i32_13 = arith.constant 0 : i32
    %26 = arith.cmpi ne, %25, %c0_i32_13 : i32
    scf.if %26 {
      %c0_16 = arith.constant 0 : index
      %c0_17 = arith.constant 0 : index
      %30 = vector.load %arg10[%c0_16, %c0_17] : memref<8x128xf32, #tpu.memory_space<vmem>>, vector<8x128xf32>
      %cst_18 = arith.constant dense<0.000000e+00> : vector<128xf32>
      %31 = vector.multi_reduction <add>, %30, %cst_18 [0] : vector<8x128xf32> to vector<128xf32>
      %32 = vector.shape_cast %31 : vector<128xf32> to vector<1x128xf32>
      %cst_19 = arith.constant 0.001953125 : f32
      %33 = vector.broadcast %cst_19 : f32 to vector<1x128xf32>
      %34 = arith.mulf %32, %33 : vector<1x128xf32>
      %c0_20 = arith.constant 0 : index
      %c0_21 = arith.constant 0 : index
      %35 = vector.load %arg11[%c0_20, %c0_21] : memref<8x128xf32, #tpu.memory_space<vmem>>, vector<8x128xf32>
      %cst_22 = arith.constant dense<0.000000e+00> : vector<128xf32>
      %36 = vector.multi_reduction <add>, %35, %cst_22 [0] : vector<8x128xf32> to vector<128xf32>
      %37 = vector.shape_cast %36 : vector<128xf32> to vector<1x128xf32>
      %cst_23 = arith.constant 0.001953125 : f32
      %38 = vector.broadcast %cst_23 : f32 to vector<1x128xf32>
      %39 = arith.mulf %37, %38 : vector<1x128xf32>
      %40 = arith.mulf %34, %34 : vector<1x128xf32>
      %41 = arith.subf %39, %40 : vector<1x128xf32>
      %cst_24 = arith.constant 0.000000e+00 : f32
      %42 = vector.broadcast %cst_24 : f32 to vector<1x128xf32>
      %43 = arith.maximumf %41, %42 : vector<1x128xf32>
      %cst_25 = arith.constant 9.99999974E-6 : f32
      %44 = vector.broadcast %cst_25 : f32 to vector<1x128xf32>
      %45 = arith.addf %43, %44 : vector<1x128xf32>
      %46 = math.rsqrt %45 : vector<1x128xf32>
      %c0_26 = arith.constant 0 : index
      %c0_27 = arith.constant 0 : index
      %47 = vector.load %arg5[%c0_26, %c0_27] : memref<1x128xf32, #tpu.memory_space<vmem>>, vector<1x128xf32>
      %48 = arith.mulf %47, %46 : vector<1x128xf32>
      %c0_28 = arith.constant 0 : index
      %c0_29 = arith.constant 0 : index
      %49 = vector.load %arg12[%c0_28, %c0_29] : memref<1x128xf32, #tpu.memory_space<vmem>>, vector<1x128xf32>
      tpu.vector_store %arg12[%c0_28, %c0_29], %48 {strides = array<i32>} : memref<1x128xf32, #tpu.memory_space<vmem>>, vector<1x128xf32>,
      %c0_30 = arith.constant 0 : index
      %c0_31 = arith.constant 0 : index
      %50 = vector.load %arg6[%c0_30, %c0_31] : memref<1x128xf32, #tpu.memory_space<vmem>>, vector<1x128xf32>
      %c0_32 = arith.constant 0 : index
      %c0_33 = arith.constant 0 : index
      %51 = vector.load %arg5[%c0_32, %c0_33] : memref<1x128xf32, #tpu.memory_space<vmem>>, vector<1x128xf32>
      %52 = arith.mulf %34, %51 : vector<1x128xf32>
      %53 = arith.mulf %52, %46 : vector<1x128xf32>
      %54 = arith.subf %50, %53 : vector<1x128xf32>
      %c0_34 = arith.constant 0 : index
      %c0_35 = arith.constant 0 : index
      %55 = vector.load %arg13[%c0_34, %c0_35] : memref<1x128xf32, #tpu.memory_space<vmem>>, vector<1x128xf32>
      tpu.vector_store %arg13[%c0_34, %c0_35], %54 {strides = array<i32>} : memref<1x128xf32, #tpu.memory_space<vmem>>, vector<1x128xf32>,
    } else {
    }
    %c1_i32_14 = arith.constant 1 : i32
    %27 = arith.cmpi eq, %arg0, %c1_i32_14 : i32
    %28 = arith.extui %27 : i1 to i32
    %c0_i32_15 = arith.constant 0 : i32
    %29 = arith.cmpi ne, %28, %c0_i32_15 : i32
    scf.if %29 {
      %c0_16 = arith.constant 0 : index
      %c0_17 = arith.constant 0 : index
      %30 = vector.load %arg12[%c0_16, %c0_17] : memref<1x128xf32, #tpu.memory_space<vmem>>, vector<1x128xf32>
      %31 = vector.broadcast %30 : vector<1x128xf32> to vector<256x128xf32>
      %32 = arith.mulf %13, %31 : vector<256x128xf32>
      %c0_18 = arith.constant 0 : index
      %c0_19 = arith.constant 0 : index
      %33 = vector.load %arg13[%c0_18, %c0_19] : memref<1x128xf32, #tpu.memory_space<vmem>>, vector<1x128xf32>
      %34 = vector.broadcast %33 : vector<1x128xf32> to vector<256x128xf32>
      %35 = arith.addf %32, %34 : vector<256x128xf32>
      %c0_20 = arith.constant 0 : index
      %c0_21 = arith.constant 0 : index
      %36 = vector.load %arg7[%c0_20, %c0_21] : memref<128x8xf32, #tpu.memory_space<vmem>>, vector<128x8xf32>
      %cst_22 = arith.constant dense<0.000000e+00> : vector<256x8xf32>
      %37 = tpu.matmul %35, %36, %cst_22 {dimension_numbers = #tpu.dot_dimension_numbers<[1], [0], [0], [1], [0, 0, 1, 1], [], []>} : vector<256x128xf32>, vector<128x8xf32>, vector<256x8xf32> -> vector<256x8xf32>
      %c0_23 = arith.constant 0 : index
      %c0_24 = arith.constant 0 : index
      %38 = vector.load %arg8[%c0_23, %c0_24] : memref<1x8xf32, #tpu.memory_space<vmem>>, vector<1x8xf32>
      %39 = vector.broadcast %38 : vector<1x8xf32> to vector<256x8xf32>
      %40 = arith.addf %37, %39 : vector<256x8xf32>
      %cst_25 = arith.constant dense<0xFF800000> : vector<256xf32>
      %41 = vector.multi_reduction <maximumf>, %40, %cst_25 [1] : vector<256x8xf32> to vector<256xf32>
      %42 = vector.shape_cast %41 : vector<256xf32> to vector<256x1xf32>
      %43 = vector.broadcast %42 : vector<256x1xf32> to vector<256x8xf32>
      %44 = arith.subf %40, %43 : vector<256x8xf32>
      %45 = math.exp %44 : vector<256x8xf32>
      %cst_26 = arith.constant dense<0.000000e+00> : vector<256xf32>
      %46 = vector.multi_reduction <add>, %45, %cst_26 [1] : vector<256x8xf32> to vector<256xf32>
      %47 = vector.shape_cast %46 : vector<256xf32> to vector<256x1xf32>
      %48 = vector.broadcast %47 : vector<256x1xf32> to vector<256x8xf32>
      %49 = arith.divf %45, %48 : vector<256x8xf32>
      %c0_27 = arith.constant 0 : index
      %c0_28 = arith.constant 0 : index
      %50 = vector.load %arg9[%c0_27, %c0_28] : memref<256x8xf32, #tpu.memory_space<vmem>>, vector<256x8xf32>
      tpu.vector_store %arg9[%c0_27, %c0_28], %49 {strides = array<i32>} : memref<256x8xf32, #tpu.memory_space<vmem>>, vector<256x8xf32>,
    } else {
    }
    return
  }
  func.func @transform_0(%arg0: i32, %arg1: i32) -> (i32, i32) {
    %c0_i32 = arith.constant 0 : i32
    %c0_i32_0 = arith.constant 0 : i32
    return %arg1, %c0_i32 : i32, i32
  }
  func.func @transform_1(%arg0: i32, %arg1: i32) -> (i32, i32) {
    %c0_i32 = arith.constant 0 : i32
    %c0_i32_0 = arith.constant 0 : i32
    %c0_i32_1 = arith.constant 0 : i32
    return %c0_i32, %c0_i32_0 : i32, i32
  }
  func.func @transform_2(%arg0: i32, %arg1: i32) -> (i32, i32) {
    %c0_i32 = arith.constant 0 : i32
    %c0_i32_0 = arith.constant 0 : i32
    %c0_i32_1 = arith.constant 0 : i32
    return %c0_i32, %c0_i32_0 : i32, i32
  }
  func.func @transform_3(%arg0: i32, %arg1: i32) -> (i32, i32) {
    %c0_i32 = arith.constant 0 : i32
    %c0_i32_0 = arith.constant 0 : i32
    %c0_i32_1 = arith.constant 0 : i32
    return %c0_i32, %c0_i32_0 : i32, i32
  }
  func.func @transform_4(%arg0: i32, %arg1: i32) -> (i32, i32) {
    %c0_i32 = arith.constant 0 : i32
    %c0_i32_0 = arith.constant 0 : i32
    %c0_i32_1 = arith.constant 0 : i32
    return %c0_i32, %c0_i32_0 : i32, i32
  }
  func.func @transform_5(%arg0: i32, %arg1: i32) -> (i32, i32) {
    %c0_i32 = arith.constant 0 : i32
    %c0_i32_0 = arith.constant 0 : i32
    %c0_i32_1 = arith.constant 0 : i32
    return %c0_i32, %c0_i32_0 : i32, i32
  }
  func.func @transform_6(%arg0: i32, %arg1: i32) -> (i32, i32) {
    %c0_i32 = arith.constant 0 : i32
    %c0_i32_0 = arith.constant 0 : i32
    %c0_i32_1 = arith.constant 0 : i32
    return %c0_i32, %c0_i32_0 : i32, i32
  }
  func.func @transform_7(%arg0: i32, %arg1: i32) -> (i32, i32) {
    %0 = arith.muli %arg0, %arg1 : i32
    %c0_i32 = arith.constant 0 : i32
    %c0_i32_0 = arith.constant 0 : i32
    return %0, %c0_i32 : i32, i32
  }
}

</mosaic_0001>

<llo_original>
// kernel: net_forward.1
$region0: #{net_forward.1}
  #allocation0 [shape = 'u32[]', space=smem, size = 0x4, offset = 0x4, fixed_abs, tag = 'smem constant byte address 0x4 - core index']
  #allocation1 [shape = 'u32[144,128]{1,0:T(1,128)}', space=vmem, size = 0x12000, scoped, tag = 'internal scratch']
  #allocation2 [shape = 'f32[8,128]{1,0:T(8,128)}', space=vmem, size = 0x1000, scoped, tag = 'scratch operand']
  #allocation3 [shape = 'f32[8,128]{1,0:T(8,128)}', space=vmem, size = 0x1000, scoped, tag = 'scratch operand']
  #allocation4 [shape = 'f32[1,128]{1,0:T(1,128)}', space=vmem, size = 0x200, scoped, tag = 'scratch operand']
  #allocation5 [shape = 'f32[1,128]{1,0:T(1,128)}', space=vmem, size = 0x200, scoped, tag = 'scratch operand']
  %s0 = inlined_call_operand.vmem [shape: f32[512,16], index: 0, kind: input, shape index: {}]
  %s1 = inlined_call_operand.vmem [shape: f32[16,128], index: 1, kind: input, shape index: {}]
  %s2 = inlined_call_operand.vmem [shape: f32[1,128], index: 2, kind: input, shape index: {}]
  %s3 = inlined_call_operand.vmem [shape: f32[1,128], index: 3, kind: input, shape index: {}]
  %s4 = inlined_call_operand.vmem [shape: f32[1,128], index: 4, kind: input, shape index: {}]
  %s5 = inlined_call_operand.vmem [shape: f32[128,8], index: 5, kind: input, shape index: {}]
  %s6 = inlined_call_operand.vmem [shape: f32[1,8], index: 6, kind: input, shape index: {}]
  %s7 = inlined_call_operand.vmem [shape: f32[512,8], index: 7, kind: output, shape index: {}]
  %s8 = sld [smem:[#allocation0]]
  $region77: #{net_forward.1} parent=0
    _
  %s10 = ssub.s32 1, %s8
  %s11 = scalar_select 0, %s10, %s8
  loop: start=0, step=1, limit=6
  $region2: #{net_forward.1} parent=0 // loop_pre_header
    _
  $region3: #{net_forward.1} parent=0 // loop_header
    %s13 = sphi 0, %s17
    %p14 = scmp.ge.s32.totalorder %s13, 6
    %s20 = sphi 0, %s32
    %s21 = sphi 0, %s28
    %s22 = sphi 0, %s20
    %s23 = sphi 0, %s21
    %s24 = sphi 0, %s22
    %s25 = sphi 0, %s23
    %s35 = sphi 0, %s37
    %s38 = sphi 0, %s35
    %s39 = sphi 0, %s38
    %s55 = sphi 0, %s39
    %s59 = sphi 0, %s59
    %s61 = sphi 0, %s59
    %s62 = sphi 0, %s61
    %s76 = sphi 0, %s62
    %s80 = sphi 0, %s80
    %s82 = sphi 0, %s80
    %s83 = sphi 0, %s82
    %s97 = sphi 0, %s83
    %s101 = sphi 0, %s101
    %s103 = sphi 0, %s101
    %s104 = sphi 0, %s103
    %s118 = sphi 0, %s104
    %s122 = sphi 0, %s122
    %s124 = sphi 0, %s122
    %s125 = sphi 0, %s124
    %s139 = sphi 0, %s125
    %s143 = sphi 0, %s143
    %s145 = sphi 0, %s143
    %s146 = sphi 0, %s145
    %s160 = sphi 0, %s146
    %s164 = sphi 0, %s164
    %s166 = sphi 0, %s164
    %s167 = sphi 0, %s166
    %s181 = sphi 0, %s167
    %s189 = sphi 0, %s191
    %s192 = sphi 0, %s189
    %s193 = sphi 0, %s192
    %s209 = sphi 0, %s193
  $region4: #{net_forward.1} parent=0 // loop_header_branch
    %16 = sbr.rel (%p14) target = $region8
  $region5: #{net_forward.1} parent=0 // loop_body
    %s18 = ssub.s32 %s13, 1
    %s19 = ssub.s32 %s13, 2
    %s26 = sadd.s32 1, %s21
    %p27 = scmp.ge.s32.totalorder %s26, 2
    %s28 = scalar_select %p27, 0, %s26
    %s29 = sadd.s32 1, %s20
    %s30 = scalar_select %p27, %s29, %s20
    %p31 = scmp.ge.s32.totalorder %s30, 2
    %s32 = scalar_select %p31, 0, %s30
    %s33 = ssub.s32 %s21, %s28
    %p34 = scmp.eq.s32.totalorder %s33, 0
    %s36 = sadd.s32 %s35, 1
    %s37 = scalar_select %p34, %s35, %s36
    %p40 = pneg %p34
    %p41 = scmp.eq.s32.totalorder %s13, 3
    %p42 = por %p40, %p41
    %p43 = scmp.ne.s32.totalorder %s35, %s38
    %p44 = scmp.eq.s32.totalorder %s13, 0
    %p45 = por %p43, %p44
    %p46 = scmp.ne.s32.totalorder %s35, %s38
    %p47 = scmp.eq.s32.totalorder %s18, 3
    %p48 = por %p46, %p47
    %p49 = scmp.ne.s32.totalorder %s38, %s39
    %p50 = scmp.eq.s32.totalorder %s18, 0
    %p51 = por %p49, %p50
    %p52 = scmp.ne.s32.totalorder %s38, %s39
    %p53 = scmp.eq.s32.totalorder %s19, 3
    %p54 = por %p52, %p53
    %p56 = scmp.ne.s32.totalorder %s39, %s55
    %p57 = scmp.eq.s32.totalorder %s19, 0
    %p58 = por %p56, %p57
    %s60 = sadd.s32 %s59, 1
    %p63 = scmp.eq.s32.totalorder %s13, 3
    %p64 = scmp.ne.s32.totalorder %s59, %s61
    %p65 = scmp.eq.s32.totalorder %s13, 0
    %p66 = por %p64, %p65
    %p67 = scmp.ne.s32.totalorder %s59, %s61
    %p68 = scmp.eq.s32.totalorder %s18, 3
    %p69 = por %p67, %p68
    %p70 = scmp.ne.s32.totalorder %s61, %s62
    %p71 = scmp.eq.s32.totalorder %s18, 0
    %p72 = por %p70, %p71
    %p73 = scmp.ne.s32.totalorder %s61, %s62
    %p74 = scmp.eq.s32.totalorder %s19, 3
    %p75 = por %p73, %p74
    %p77 = scmp.ne.s32.totalorder %s62, %s76
    %p78 = scmp.eq.s32.totalorder %s19, 0
    %p79 = por %p77, %p78
    %s81 = sadd.s32 %s80, 1
    %p84 = scmp.eq.s32.totalorder %s13, 3
    %p85 = scmp.ne.s32.totalorder %s80, %s82
    %p86 = scmp.eq.s32.totalorder %s13, 0
    %p87 = por %p85, %p86
    %p88 = scmp.ne.s32.totalorder %s80, %s82
    %p89 = scmp.eq.s32.totalorder %s18, 3
    %p90 = por %p88, %p89
    %p91 = scmp.ne.s32.totalorder %s82, %s83
    %p92 = scmp.eq.s32.totalorder %s18, 0
    %p93 = por %p91, %p92
    %p94 = scmp.ne.s32.totalorder %s82, %s83
    %p95 = scmp.eq.s32.totalorder %s19, 3
    %p96 = por %p94, %p95
    %p98 = scmp.ne.s32.totalorder %s83, %s97
    %p99 = scmp.eq.s32.totalorder %s19, 0
    %p100 = por %p98, %p99
    %s102 = sadd.s32 %s101, 1
    %p105 = scmp.eq.s32.totalorder %s13, 3
    %p106 = scmp.ne.s32.totalorder %s101, %s103
    %p107 = scmp.eq.s32.totalorder %s13, 0
    %p108 = por %p106, %p107
    %p109 = scmp.ne.s32.totalorder %s101, %s103
    %p110 = scmp.eq.s32.totalorder %s18, 3
    %p111 = por %p109, %p110
    %p112 = scmp.ne.s32.totalorder %s103, %s104
    %p113 = scmp.eq.s32.totalorder %s18, 0
    %p114 = por %p112, %p113
    %p115 = scmp.ne.s32.totalorder %s103, %s104
    %p116 = scmp.eq.s32.totalorder %s19, 3
    %p117 = por %p115, %p116
    %p119 = scmp.ne.s32.totalorder %s104, %s118
    %p120 = scmp.eq.s32.totalorder %s19, 0
    %p121 = por %p119, %p120
    %s123 = sadd.s32 %s122, 1
    %p126 = scmp.eq.s32.totalorder %s13, 3
    %p127 = scmp.ne.s32.totalorder %s122, %s124
    %p128 = scmp.eq.s32.totalorder %s13, 0
    %p129 = por %p127, %p128
    %p130 = scmp.ne.s32.totalorder %s122, %s124
    %p131 = scmp.eq.s32.totalorder %s18, 3
    %p132 = por %p130, %p131
    %p133 = scmp.ne.s32.totalorder %s124, %s125
    %p134 = scmp.eq.s32.totalorder %s18, 0
    %p135 = por %p133, %p134
    %p136 = scmp.ne.s32.totalorder %s124, %s125
    %p137 = scmp.eq.s32.totalorder %s19, 3
    %p138 = por %p136, %p137
    %p140 = scmp.ne.s32.totalorder %s125, %s139
    %p141 = scmp.eq.s32.totalorder %s19, 0
    %p142 = por %p140, %p141
    %s144 = sadd.s32 %s143, 1
    %p147 = scmp.eq.s32.totalorder %s13, 3
    %p148 = scmp.ne.s32.totalorder %s143, %s145
    %p149 = scmp.eq.s32.totalorder %s13, 0
    %p150 = por %p148, %p149
    %p151 = scmp.ne.s32.totalorder %s143, %s145
    %p152 = scmp.eq.s32.totalorder %s18, 3
    %p153 = por %p151, %p152
    %p154 = scmp.ne.s32.totalorder %s145, %s146
    %p155 = scmp.eq.s32.totalorder %s18, 0
    %p156 = por %p154, %p155
    %p157 = scmp.ne.s32.totalorder %s145, %s146
    %p158 = scmp.eq.s32.totalorder %s19, 3
    %p159 = por %p157, %p158
    %p161 = scmp.ne.s32.totalorder %s146, %s160
    %p162 = scmp.eq.s32.totalorder %s19, 0
    %p163 = por %p161, %p162
    %s165 = sadd.s32 %s164, 1
    %p168 = scmp.eq.s32.totalorder %s13, 3
    %p169 = scmp.ne.s32.totalorder %s164, %s166
    %p170 = scmp.eq.s32.totalorder %s13, 0
    %p171 = por %p169, %p170
    %p172 = scmp.ne.s32.totalorder %s164, %s166
    %p173 = scmp.eq.s32.totalorder %s18, 3
    %p174 = por %p172, %p173
    %p175 = scmp.ne.s32.totalorder %s166, %s167
    %p176 = scmp.eq.s32.totalorder %s18, 0
    %p177 = por %p175, %p176
    %p178 = scmp.ne.s32.totalorder %s166, %s167
    %p179 = scmp.eq.s32.totalorder %s19, 3
    %p180 = por %p178, %p179
    %p182 = scmp.ne.s32.totalorder %s167, %s181
    %p183 = scmp.eq.s32.totalorder %s19, 0
    %p184 = por %p182, %p183
    %s185 = smul.u32 %s20, %s21
    %s186 = smul.u32 %s32, %s28
    %s187 = ssub.s32 %s185, %s186
    %p188 = scmp.eq.s32.totalorder %s187, 0
    %s190 = sadd.s32 %s189, 1
    %s191 = scalar_select %p188, %s189, %s190
    %p194 = pneg %p188
    %p195 = scmp.eq.s32.totalorder %s13, 3
    %p196 = por %p194, %p195
    %p197 = scmp.ne.s32.totalorder %s189, %s192
    %p198 = scmp.eq.s32.totalorder %s13, 0
    %p199 = por %p197, %p198
    %p200 = scmp.ne.s32.totalorder %s189, %s192
    %p201 = scmp.eq.s32.totalorder %s18, 3
    %p202 = por %p200, %p201
    %p203 = scmp.ne.s32.totalorder %s192, %s193
    %p204 = scmp.eq.s32.totalorder %s18, 0
    %p205 = por %p203, %p204
    %p206 = scmp.ne.s32.totalorder %s192, %s193
    %p207 = scmp.eq.s32.totalorder %s19, 3
    %p208 = por %p206, %p207
    %p210 = scmp.ne.s32.totalorder %s193, %s209
    %p211 = scmp.eq.s32.totalorder %s19, 0
    %p212 = por %p210, %p211
    %p213 = scmp.le.s32.totalorder 1, %s13
    %p214 = scmp.lt.s32.totalorder %s13, 5
    %p215 = pnand %p213, %p214
    %p216 = pneg %p215
    // Predicated region
    $region9: #{net_forward.1} parent=5 // pred_check
      _
    $region10: #{net_forward.1} parent=5 // pred_check_branch
      %218 = sbr.rel (%p215) target = $region12
    $region11: #{net_forward.1} parent=5 // pred_region
      %s219 = ssub.s32 %s13, 1
      // Predicated region
      $region13: #{net_forward.1} parent=11 // pred_check
        %p220 = pneg %p72
      $region14: #{net_forward.1} parent=11 // pred_check_branch
        %222 = sbr.rel (%p220) target = $region16
      $region15: #{net_forward.1} parent=11 // pred_region
        _
      $region16: #{net_forward.1} parent=11 // pred_fallthru
        _
      // Predicated region
      $region17: #{net_forward.1} parent=11 // pred_check
        %p223 = pneg %p93
      $region18: #{net_forward.1} parent=11 // pred_check_branch
        %225 = sbr.rel (%p223) target = $region20
      $region19: #{net_forward.1} parent=11 // pred_region
        _
      $region20: #{net_forward.1} parent=11 // pred_fallthru
        _
      // Predicated region
      $region21: #{net_forward.1} parent=11 // pred_check
        %p226 = pneg %p114
      $region22: #{net_forward.1} parent=11 // pred_check_branch
        %228 = sbr.rel (%p226) target = $region24
      $region23: #{net_forward.1} parent=11 // pred_region
        _
      $region24: #{net_forward.1} parent=11 // pred_fallthru
        _
      // Predicated region
      $region25: #{net_forward.1} parent=11 // pred_check
        %p229 = pneg %p135
      $region26: #{net_forward.1} parent=11 // pred_check_branch
        %231 = sbr.rel (%p229) target = $region28
      $region27: #{net_forward.1} parent=11 // pred_region
        _
      $region28: #{net_forward.1} parent=11 // pred_fallthru
        _
      // Predicated region
      $region29: #{net_forward.1} parent=11 // pred_check
        %p232 = pneg %p156
      $region30: #{net_forward.1} parent=11 // pred_check_branch
        %234 = sbr.rel (%p232) target = $region32
      $region31: #{net_forward.1} parent=11 // pred_region
        _
      $region32: #{net_forward.1} parent=11 // pred_fallthru
        _
      // Predicated region
      $region33: #{net_forward.1} parent=11 // pred_check
        %p235 = pneg %p177
      $region34: #{net_forward.1} parent=11 // pred_check_branch
        %237 = sbr.rel (%p235) target = $region36
      $region35: #{net_forward.1} parent=11 // pred_region
        _
      $region36: #{net_forward.1} parent=11 // pred_fallthru
        _
    $region12: #{net_forward.1} parent=5 // pred_fallthru
      _
    %p238 = scmp.lt.s32.totalorder %s13, 4
    // Predicated region
    $region37: #{net_forward.1} parent=5 // pred_check
      %p239 = pneg %p238
    $region38: #{net_forward.1} parent=5 // pred_check_branch
      %241 = sbr.rel (%p239) target = $region40
    $region39: #{net_forward.1} parent=5 // pred_region
      // Predicated region
      $region41: #{net_forward.1} parent=39 // pred_check
        %p242 = pneg %p45
      $region42: #{net_forward.1} parent=39 // pred_check_branch
        %244 = sbr.rel (%p242) target = $region44
      $region43: #{net_forward.1} parent=39 // pred_region
        %s245 = smul.u32 32, %s21
        %p246 = scmp.lt.s32.totalorder %s245, 63
        %s247 = scalar_select %p246, %s245, 63
        %s248 = smul.addr %s247, 8
        %s249 = scalar_lea.vmem %s0, %s248
        %s250 = smul.u32 32, %s21
      $region44: #{net_forward.1} parent=39 // pred_fallthru
        _
    $region40: #{net_forward.1} parent=5 // pred_fallthru
      _
    %p251 = scmp.le.s32.totalorder 1, %s13
    %p252 = scmp.lt.s32.totalorder %s13, 5
    %p253 = pnand %p251, %p252
    %p254 = pneg %p253
    // Predicated region
    $region45: #{net_forward.1} parent=5 // pred_check
      _
    $region46: #{net_forward.1} parent=5 // pred_check_branch
      %256 = sbr.rel (%p253) target = $region48
    $region47: #{net_forward.1} parent=5 // pred_region
      %s257 = ssub.s32 %s13, 1
      %s258 = smul.u32 32, %s23
      %p259 = scmp.lt.s32.totalorder %s258, 63
      %s260 = scalar_select %p259, %s258, 63
      %s261 = smul.addr %s260, 8
      %s262 = scalar_lea.vmem %s0, %s261
      %p263 = pneg %p51
      %p264 = pneg %p48
      %p265 = pneg %p72
      %p266 = pneg %p69
      %p267 = pneg %p93
      %p268 = pneg %p90
      %p269 = pneg %p114
      %p270 = pneg %p111
      %p271 = pneg %p135
      %p272 = pneg %p132
      %p273 = pneg %p156
      %p274 = pneg %p153
      %p275 = pneg %p177
      %p276 = pneg %p174
      %p277 = pneg %p205
      %p278 = pneg %p202
      %s279 = smul.u32 %s22, %s23
      %s280 = smul.u32 32, %s279
      %p281 = scmp.lt.s32.totalorder %s280, 63
      %s282 = scalar_select %p281, %s280, 63
      %s283 = smul.addr %s282, 8
      %s284 = scalar_lea.vmem %s7, %s283
      %s285 = smul.u32 32, %s23
      %p286 = scmp.lt.s32.totalorder %s285, 63
      %s287 = scalar_select %p286, %s285, 63
      %s288 = smul.addr %s287, 8
      %s289 = scalar_lea.vmem %s0, %s288
      %s290 = smul.u32 32, %s23
      %s291 = smul.u32 %s22, %s23
      %s292 = smul.u32 32, %s291
      %p293 = scmp.lt.s32.totalorder %s292, 63
      %s294 = scalar_select %p293, %s292, 63
      %s295 = smul.addr %s294, 8
      %s296 = scalar_lea.vmem %s7, %s295
      %s297 = smul.u32 %s22, %s23
      %s298 = smul.u32 32, %s297
      %v299 = vld [vmem:[%s289] sm:$0xff]
      %v300 = vld [vmem:[%s289 + $0x8] sm:$0xff]
      %v301 = vld [vmem:[%s289 + $0x10] sm:$0xff]
      %v302 = vld [vmem:[%s289 + $0x18] sm:$0xff]
      %v303 = vld [vmem:[%s289 + $0x20] sm:$0xff]
      %v304 = vld [vmem:[%s289 + $0x28] sm:$0xff]
      %v305 = vld [vmem:[%s289 + $0x30] sm:$0xff]
      %v306 = vld [vmem:[%s289 + $0x38] sm:$0xff]
      %v307 = vld [vmem:[%s289 + $0x40] sm:$0xff]
      %v308 = vld [vmem:[%s289 + $0x48] sm:$0xff]
      %v309 = vld [vmem:[%s289 + $0x50] sm:$0xff]
      %v310 = vld [vmem:[%s289 + $0x58] sm:$0xff]
      %v311 = vld [vmem:[%s289 + $0x60] sm:$0xff]
      %v312 = vld [vmem:[%s289 + $0x68] sm:$0xff]
      %v313 = vld [vmem:[%s289 + $0x70] sm:$0xff]
      %v314 = vld [vmem:[%s289 + $0x78] sm:$0xff]
      %v315 = vld [vmem:[%s289 + $0x80] sm:$0xff]
      %v316 = vld [vmem:[%s289 + $0x88] sm:$0xff]
      %v317 = vld [vmem:[%s289 + $0x90] sm:$0xff]
      %v318 = vld [vmem:[%s289 + $0x98] sm:$0xff]
      %v319 = vld [vmem:[%s289 + $0xa0] sm:$0xff]
      %v320 = vld [vmem:[%s289 + $0xa8] sm:$0xff]
      %v321 = vld [vmem:[%s289 + $0xb0] sm:$0xff]
      %v322 = vld [vmem:[%s289 + $0xb8] sm:$0xff]
      %v323 = vld [vmem:[%s289 + $0xc0] sm:$0xff]
      %v324 = vld [vmem:[%s289 + $0xc8] sm:$0xff]
      %v325 = vld [vmem:[%s289 + $0xd0] sm:$0xff]
      %v326 = vld [vmem:[%s289 + $0xd8] sm:$0xff]
      %v327 = vld [vmem:[%s289 + $0xe0] sm:$0xff]
      %v328 = vld [vmem:[%s289 + $0xe8] sm:$0xff]
      %v329 = vld [vmem:[%s289 + $0xf0] sm:$0xff]
      %v330 = vld [vmem:[%s289 + $0xf8] sm:$0xff]
      %v331 = vld [vmem:[%s1] sm:$0xff]
      %v332 = vld [vmem:[%s1 + $0x8] sm:$0xff]
      %v333 = vld [vmem:[%s2] sm:$0x1]
      %v335 = vlaneseq
      %v336 = vshrl.u32 %v335, 7
      %v337 = vsub.s32 0, %v336
      %v338 = vrot.slane %v333, %v337
      %vm340 = vcmask 130048
      %v342 = vsel %vm340, %v299, 0
      %v345 = vsel %vm340, %v300, 0
      %v348 = vsel %vm340, %v301, 0
      %v351 = vsel %vm340, %v302, 0
      %v354 = vsel %vm340, %v303, 0
      %v357 = vsel %vm340, %v304, 0
      %v360 = vsel %vm340, %v305, 0
      %v363 = vsel %vm340, %v306, 0
      %v366 = vsel %vm340, %v307, 0
      %v369 = vsel %vm340, %v308, 0
      %v372 = vsel %vm340, %v309, 0
      %v375 = vsel %vm340, %v310, 0
      %v378 = vsel %vm340, %v311, 0
      %v381 = vsel %vm340, %v312, 0
      %v384 = vsel %vm340, %v313, 0
      %v387 = vsel %vm340, %v314, 0
      %v390 = vsel %vm340, %v315, 0
      %v393 = vsel %vm340, %v316, 0
      %v396 = vsel %vm340, %v317, 0
      %v399 = vsel %vm340, %v318, 0
      %v402 = vsel %vm340, %v319, 0
      %v405 = vsel %vm340, %v320, 0
      %v408 = vsel %vm340, %v321, 0
      %v411 = vsel %vm340, %v322, 0
      %v414 = vsel %vm340, %v323, 0
      %v417 = vsel %vm340, %v324, 0
      %v420 = vsel %vm340, %v325, 0
      %v423 = vsel %vm340, %v326, 0
      %v426 = vsel %vm340, %v327, 0
      %v429 = vsel %vm340, %v328, 0
      %v432 = vsel %vm340, %v329, 0
      %v435 = vsel %vm340, %v330, 0
      %437 = vmatprep.subr.mxu0 0.0
      %438 = vmatpush1.msra.mxu0 %v331
      %439 = vmatprep.subr.mxu0 0.0
      %440 = vmatpush1.msra.mxu0 %v332
      %441 = vmatprep.subr.mxu0 0.0
      %442 = vmatpush1.msra.mxu0 0.0
      %443 = vmatprep.subr.mxu0 0.0
      %444 = vmatpush1.msra.mxu0 0.0
      %445 = vmatprep.subr.mxu0 0.0
      %446 = vmatpush1.msra.mxu0 0.0
      %447 = vmatprep.subr.mxu0 0.0
      %448 = vmatpush1.msra.mxu0 0.0
      %449 = vmatprep.subr.mxu0 0.0
      %450 = vmatpush1.msra.mxu0 0.0
      %451 = vmatprep.subr.mxu0 0.0
      %452 = vmatpush1.msra.mxu0 0.0
      %453 = vmatprep.subr.mxu0 0.0
      %454 = vmatpush1.msra.mxu0 0.0
      %455 = vmatprep.subr.mxu0 0.0
      %456 = vmatpush1.msra.mxu0 0.0
      %457 = vmatprep.subr.mxu0 0.0
      %458 = vmatpush1.msra.mxu0 0.0
      %459 = vmatprep.subr.mxu0 0.0
      %460 = vmatpush1.msra.mxu0 0.0
      %461 = vmatprep.subr.mxu0 0.0
      %462 = vmatpush1.msra.mxu0 0.0
      %463 = vmatprep.subr.mxu0 0.0
      %464 = vmatpush1.msra.mxu0 0.0
      %465 = vmatprep.subr.mxu0 0.0
      %466 = vmatpush1.msra.mxu0 0.0
      %467 = vmatprep.subr.mxu0 0.0
      %468 = vmatpush1.msra.mxu0 0.0
      %469 = vmatprep.subr.mxu0 0.0
      %470 = vmatpush1.msra.mxu0 0.0
      %471 = vmatprep.subr.mxu0 0.0
      %472 = vmatpush1.msra.mxu0 0.0
      %473 = vmatprep.subr.mxu0 0.0
      %474 = vmatpush1.msra.mxu0 0.0
      %475 = vmatprep.subr.mxu0 0.0
      %476 = vmatpush1.msra.mxu0 0.0
      %477 = vmatprep.subr.mxu0 0.0
      %478 = vmatpush1.msra.mxu0 0.0
      %479 = vmatprep.subr.mxu0 0.0
      %480 = vmatpush1.msra.mxu0 0.0
      %481 = vmatprep.subr.mxu0 0.0
      %482 = vmatpush1.msra.mxu0 0.0
      %483 = vmatprep.subr.mxu0 0.0
      %484 = vmatpush1.msra.mxu0 0.0
      %485 = vmatprep.subr.mxu0 0.0
      %486 = vmatpush1.msra.mxu0 0.0
      %487 = vmatprep.subr.mxu0 0.0
      %488 = vmatpush1.msra.mxu0 0.0
      %489 = vmatprep.subr.mxu0 0.0
      %490 = vmatpush1.msra.mxu0 0.0
      %491 = vmatprep.subr.mxu0 0.0
      %492 = vmatpush1.msra.mxu0 0.0
      %493 = vmatprep.subr.mxu0 0.0
      %494 = vmatpush1.msra.mxu0 0.0
      %495 = vmatprep.subr.mxu0 0.0
      %496 = vmatpush1.msra.mxu0 0.0
      %497 = vmatprep.subr.mxu0 0.0
      %498 = vmatpush1.msra.mxu0 0.0
      %499 = vmatprep.subr.mxu0 0.0
      %500 = vmatpush1.msra.mxu0 0.0
      %501 = vmatprep.mubr.f32.mxu0 0.0
      %502 = vmatmul.mubr.f32.gmra.mrb[0].mxu0 %v342
      %v503 = vpop.f32.mrb[0].mxu0
      %v504 = vadd.f32 %v338, %v503
      %v505 = vpop.f32.mrb[0].mxu0
      %506 = vmatprep.mubr.f32.mxu0 0.0
      %507 = vmatmul.mubr.f32.gmra.mrb[0].mxu0 %v345
      %v508 = vpop.f32.mrb[0].mxu0
      %v509 = vadd.f32 %v338, %v508
      %v510 = vpop.f32.mrb[0].mxu0
      %511 = vmatprep.mubr.f32.mxu0 0.0
      %512 = vmatmul.mubr.f32.gmra.mrb[0].mxu0 %v348
      %v513 = vpop.f32.mrb[0].mxu0
      %v514 = vadd.f32 %v338, %v513
      %v515 = vpop.f32.mrb[0].mxu0
      %516 = vmatprep.mubr.f32.mxu0 0.0
      %517 = vmatmul.mubr.f32.gmra.mrb[0].mxu0 %v351
      %v518 = vpop.f32.mrb[0].mxu0
      %v519 = vadd.f32 %v338, %v518
      %v520 = vpop.f32.mrb[0].mxu0
      %521 = vmatprep.mubr.f32.mxu0 0.0
      %522 = vmatmul.mubr.f32.gmra.mrb[0].mxu0 %v354
      %v523 = vpop.f32.mrb[0].mxu0
      %v524 = vadd.f32 %v338, %v523
      %v525 = vpop.f32.mrb[0].mxu0
      %526 = vmatprep.mubr.f32.mxu0 0.0
      %527 = vmatmul.mubr.f32.gmra.mrb[0].mxu0 %v357
      %v528 = vpop.f32.mrb[0].mxu0
      %v529 = vadd.f32 %v338, %v528
      %v530 = vpop.f32.mrb[0].mxu0
      %531 = vmatprep.mubr.f32.mxu0 0.0
      %532 = vmatmul.mubr.f32.gmra.mrb[0].mxu0 %v360
      %v533 = vpop.f32.mrb[0].mxu0
      %v534 = vadd.f32 %v338, %v533
      %v535 = vpop.f32.mrb[0].mxu0
      %536 = vmatprep.mubr.f32.mxu0 0.0
      %537 = vmatmul.mubr.f32.gmra.mrb[0].mxu0 %v363
      %v538 = vpop.f32.mrb[0].mxu0
      %v539 = vadd.f32 %v338, %v538
      %v540 = vpop.f32.mrb[0].mxu0
      %541 = vmatprep.mubr.f32.mxu0 0.0
      %542 = vmatmul.mubr.f32.gmra.mrb[0].mxu0 %v366
      %v543 = vpop.f32.mrb[0].mxu0
      %v544 = vadd.f32 %v338, %v543
      %v545 = vpop.f32.mrb[0].mxu0
      %546 = vmatprep.mubr.f32.mxu0 0.0
      %547 = vmatmul.mubr.f32.gmra.mrb[0].mxu0 %v369
      %v548 = vpop.f32.mrb[0].mxu0
      %v549 = vadd.f32 %v338, %v548
      %v550 = vpop.f32.mrb[0].mxu0
      %551 = vmatprep.mubr.f32.mxu0 0.0
      %552 = vmatmul.mubr.f32.gmra.mrb[0].mxu0 %v372
      %v553 = vpop.f32.mrb[0].mxu0
      %v554 = vadd.f32 %v338, %v553
      %v555 = vpop.f32.mrb[0].mxu0
      %556 = vmatprep.mubr.f32.mxu0 0.0
      %557 = vmatmul.mubr.f32.gmra.mrb[0].mxu0 %v375
      %v558 = vpop.f32.mrb[0].mxu0
      %v559 = vadd.f32 %v338, %v558
      %v560 = vpop.f32.mrb[0].mxu0
      %561 = vmatprep.mubr.f32.mxu0 0.0
      %562 = vmatmul.mubr.f32.gmra.mrb[0].mxu0 %v378
      %v563 = vpop.f32.mrb[0].mxu0
      %v564 = vadd.f32 %v338, %v563
      %v565 = vpop.f32.mrb[0].mxu0
      %566 = vmatprep.mubr.f32.mxu0 0.0
      %567 = vmatmul.mubr.f32.gmra.mrb[0].mxu0 %v381
      %v568 = vpop.f32.mrb[0].mxu0
      %v569 = vadd.f32 %v338, %v568
      %v570 = vpop.f32.mrb[0].mxu0
      %571 = vmatprep.mubr.f32.mxu0 0.0
      %572 = vmatmul.mubr.f32.gmra.mrb[0].mxu0 %v384
      %v573 = vpop.f32.mrb[0].mxu0
      %v574 = vadd.f32 %v338, %v573
      %v575 = vpop.f32.mrb[0].mxu0
      %576 = vmatprep.mubr.f32.mxu0 0.0
      %577 = vmatmul.mubr.f32.gmra.mrb[0].mxu0 %v387
      %v578 = vpop.f32.mrb[0].mxu0
      %v579 = vadd.f32 %v338, %v578
      %v580 = vpop.f32.mrb[0].mxu0
      %581 = vmatprep.mubr.f32.mxu0 0.0
      %582 = vmatmul.mubr.f32.gmra.mrb[0].mxu0 %v390
      %v583 = vpop.f32.mrb[0].mxu0
      %v584 = vadd.f32 %v338, %v583
      %v585 = vpop.f32.mrb[0].mxu0
      %586 = vmatprep.mubr.f32.mxu0 0.0
      %587 = vmatmul.mubr.f32.gmra.mrb[0].mxu0 %v393
      %v588 = vpop.f32.mrb[0].mxu0
      %v589 = vadd.f32 %v338, %v588
      %v590 = vpop.f32.mrb[0].mxu0
      %591 = vmatprep.mubr.f32.mxu0 0.0
      %592 = vmatmul.mubr.f32.gmra.mrb[0].mxu0 %v396
      %v593 = vpop.f32.mrb[0].mxu0
      %v594 = vadd.f32 %v338, %v593
      %v595 = vpop.f32.mrb[0].mxu0
      %596 = vmatprep.mubr.f32.mxu0 0.0
      %597 = vmatmul.mubr.f32.gmra.mrb[0].mxu0 %v399
      %v598 = vpop.f32.mrb[0].mxu0
      %v599 = vadd.f32 %v338, %v598
      %v600 = vpop.f32.mrb[0].mxu0
      %601 = vmatprep.mubr.f32.mxu0 0.0
      %602 = vmatmul.mubr.f32.gmra.mrb[0].mxu0 %v402
      %v603 = vpop.f32.mrb[0].mxu0
      %v604 = vadd.f32 %v338, %v603
      %v605 = vpop.f32.mrb[0].mxu0
      %606 = vmatprep.mubr.f32.mxu0 0.0
      %607 = vmatmul.mubr.f32.gmra.mrb[0].mxu0 %v405
      %v608 = vpop.f32.mrb[0].mxu0
      %v609 = vadd.f32 %v338, %v608
      %v610 = vpop.f32.mrb[0].mxu0
      %611 = vmatprep.mubr.f32.mxu0 0.0
      %612 = vmatmul.mubr.f32.gmra.mrb[0].mxu0 %v408
      %v613 = vpop.f32.mrb[0].mxu0
      %v614 = vadd.f32 %v338, %v613
      %v615 = vpop.f32.mrb[0].mxu0
      %616 = vmatprep.mubr.f32.mxu0 0.0
      %617 = vmatmul.mubr.f32.gmra.mrb[0].mxu0 %v411
      %v618 = vpop.f32.mrb[0].mxu0
      %v619 = vadd.f32 %v338, %v618
      %v620 = vpop.f32.mrb[0].mxu0
      %621 = vmatprep.mubr.f32.mxu0 0.0
      %622 = vmatmul.mubr.f32.gmra.mrb[0].mxu0 %v414
      %v623 = vpop.f32.mrb[0].mxu0
      %v624 = vadd.f32 %v338, %v623
      %v625 = vpop.f32.mrb[0].mxu0
      %626 = vmatprep.mubr.f32.mxu0 0.0
      %627 = vmatmul.mubr.f32.gmra.mrb[0].mxu0 %v417
      %v628 = vpop.f32.mrb[0].mxu0
      %v629 = vadd.f32 %v338, %v628
      %v630 = vpop.f32.mrb[0].mxu0
      %631 = vmatprep.mubr.f32.mxu0 0.0
      %632 = vmatmul.mubr.f32.gmra.mrb[0].mxu0 %v420
      %v633 = vpop.f32.mrb[0].mxu0
      %v634 = vadd.f32 %v338, %v633
      %v635 = vpop.f32.mrb[0].mxu0
      %636 = vmatprep.mubr.f32.mxu0 0.0
      %637 = vmatmul.mubr.f32.gmra.mrb[0].mxu0 %v423
      %v638 = vpop.f32.mrb[0].mxu0
      %v639 = vadd.f32 %v338, %v638
      %v640 = vpop.f32.mrb[0].mxu0
      %641 = vmatprep.mubr.f32.mxu0 0.0
      %642 = vmatmul.mubr.f32.gmra.mrb[0].mxu0 %v426
      %v643 = vpop.f32.mrb[0].mxu0
      %v644 = vadd.f32 %v338, %v643
      %v645 = vpop.f32.mrb[0].mxu0
      %646 = vmatprep.mubr.f32.mxu0 0.0
      %647 = vmatmul.mubr.f32.gmra.mrb[0].mxu0 %v429
      %v648 = vpop.f32.mrb[0].mxu0
      %v649 = vadd.f32 %v338, %v648
      %v650 = vpop.f32.mrb[0].mxu0
      %651 = vmatprep.mubr.f32.mxu0 0.0
      %652 = vmatmul.mubr.f32.gmra.mrb[0].mxu0 %v432
      %v653 = vpop.f32.mrb[0].mxu0
      %v654 = vadd.f32 %v338, %v653
      %v655 = vpop.f32.mrb[0].mxu0
      %656 = vmatprep.mubr.f32.mxu0 0.0
      %657 = vmatmul.mubr.f32.gmra.mrb[0].mxu0 %v435
      %v658 = vpop.f32.mrb[0].mxu0
      %v659 = vadd.f32 %v338, %v658
      %v660 = vpop.f32.mrb[0].mxu0
      %661 = vdwg.mxu0
      %v662 = vmul.f32 %v504, 0.5
      %v663 = vmul.f32 %v509, 0.5
      %v664 = vmul.f32 %v514, 0.5
      %v665 = vmul.f32 %v519, 0.5
      %v666 = vmul.f32 %v524, 0.5
      %v667 = vmul.f32 %v529, 0.5
      %v668 = vmul.f32 %v534, 0.5
      %v669 = vmul.f32 %v539, 0.5
      %v670 = vmul.f32 %v544, 0.5
      %v671 = vmul.f32 %v549, 0.5
      %v672 = vmul.f32 %v554, 0.5
      %v673 = vmul.f32 %v559, 0.5
      %v674 = vmul.f32 %v564, 0.5
      %v675 = vmul.f32 %v569, 0.5
      %v676 = vmul.f32 %v574, 0.5
      %v677 = vmul.f32 %v579, 0.5
      %v678 = vmul.f32 %v584, 0.5
      %v679 = vmul.f32 %v589, 0.5
      %v680 = vmul.f32 %v594, 0.5
      %v681 = vmul.f32 %v599, 0.5
      %v682 = vmul.f32 %v604, 0.5
      %v683 = vmul.f32 %v609, 0.5
      %v684 = vmul.f32 %v614, 0.5
      %v685 = vmul.f32 %v619, 0.5
      %v686 = vmul.f32 %v624, 0.5
      %v687 = vmul.f32 %v629, 0.5
      %v688 = vmul.f32 %v634, 0.5
      %v689 = vmul.f32 %v639, 0.5
      %v690 = vmul.f32 %v644, 0.5
      %v691 = vmul.f32 %v649, 0.5
      %v692 = vmul.f32 %v654, 0.5
      %v693 = vmul.f32 %v659, 0.5
      %v694 = vtanh.pop %v662
      %v695 = vtanh.pop %v663
      %v696 = vtanh.pop %v664
      %v697 = vtanh.pop %v665
      %v698 = vtanh.pop %v666
      %v699 = vtanh.pop %v667
      %v700 = vtanh.pop %v668
      %v701 = vtanh.pop %v669
      %v702 = vtanh.pop %v670
      %v703 = vtanh.pop %v671
      %v704 = vtanh.pop %v672
      %v705 = vtanh.pop %v673
      %v706 = vtanh.pop %v674
      %v707 = vtanh.pop %v675
      %v708 = vtanh.pop %v676
      %v709 = vtanh.pop %v677
      %v710 = vtanh.pop %v678
      %v711 = vtanh.pop %v679
      %v712 = vtanh.pop %v680
      %v713 = vtanh.pop %v681
      %v714 = vtanh.pop %v682
      %v715 = vtanh.pop %v683
      %v716 = vtanh.pop %v684
      %v717 = vtanh.pop %v685
      %v718 = vtanh.pop %v686
      %v719 = vtanh.pop %v687
      %v720 = vtanh.pop %v688
      %v721 = vtanh.pop %v689
      %v722 = vtanh.pop %v690
      %v723 = vtanh.pop %v691
      %v724 = vtanh.pop %v692
      %v725 = vtanh.pop %v693
      %v726 = vadd.f32 %v694, 1.0
      %v727 = vadd.f32 %v695, 1.0
      %v728 = vadd.f32 %v696, 1.0
      %v729 = vadd.f32 %v697, 1.0
      %v730 = vadd.f32 %v698, 1.0
      %v731 = vadd.f32 %v699, 1.0
      %v732 = vadd.f32 %v700, 1.0
      %v733 = vadd.f32 %v701, 1.0
      %v734 = vadd.f32 %v702, 1.0
      %v735 = vadd.f32 %v703, 1.0
      %v736 = vadd.f32 %v704, 1.0
      %v737 = vadd.f32 %v705, 1.0
      %v738 = vadd.f32 %v706, 1.0
      %v739 = vadd.f32 %v707, 1.0
      %v740 = vadd.f32 %v708, 1.0
      %v741 = vadd.f32 %v709, 1.0
      %v742 = vadd.f32 %v710, 1.0
      %v743 = vadd.f32 %v711, 1.0
      %v744 = vadd.f32 %v712, 1.0
      %v745 = vadd.f32 %v713, 1.0
      %v746 = vadd.f32 %v714, 1.0
      %v747 = vadd.f32 %v715, 1.0
      %v748 = vadd.f32 %v716, 1.0
      %v749 = vadd.f32 %v717, 1.0
      %v750 = vadd.f32 %v718, 1.0
      %v751 = vadd.f32 %v719, 1.0
      %v752 = vadd.f32 %v720, 1.0
      %v753 = vadd.f32 %v721, 1.0
      %v754 = vadd.f32 %v722, 1.0
      %v755 = vadd.f32 %v723, 1.0
      %v756 = vadd.f32 %v724, 1.0
      %v757 = vadd.f32 %v725, 1.0
      %v758 = vmul.f32 %v726, 0.5
      %v759 = vmul.f32 %v727, 0.5
      %v760 = vmul.f32 %v728, 0.5
      %v761 = vmul.f32 %v729, 0.5
      %v762 = vmul.f32 %v730, 0.5
      %v763 = vmul.f32 %v731, 0.5
      %v764 = vmul.f32 %v732, 0.5
      %v765 = vmul.f32 %v733, 0.5
      %v766 = vmul.f32 %v734, 0.5
      %v767 = vmul.f32 %v735, 0.5
      %v768 = vmul.f32 %v736, 0.5
      %v769 = vmul.f32 %v737, 0.5
      %v770 = vmul.f32 %v738, 0.5
      %v771 = vmul.f32 %v739, 0.5
      %v772 = vmul.f32 %v740, 0.5
      %v773 = vmul.f32 %v741, 0.5
      %v774 = vmul.f32 %v742, 0.5
      %v775 = vmul.f32 %v743, 0.5
      %v776 = vmul.f32 %v744, 0.5
      %v777 = vmul.f32 %v745, 0.5
      %v778 = vmul.f32 %v746, 0.5
      %v779 = vmul.f32 %v747, 0.5
      %v780 = vmul.f32 %v748, 0.5
      %v781 = vmul.f32 %v749, 0.5
      %v782 = vmul.f32 %v750, 0.5
      %v783 = vmul.f32 %v751, 0.5
      %v784 = vmul.f32 %v752, 0.5
      %v785 = vmul.f32 %v753, 0.5
      %v786 = vmul.f32 %v754, 0.5
      %v787 = vmul.f32 %v755, 0.5
      %v788 = vmul.f32 %v756, 0.5
      %v789 = vmul.f32 %v757, 0.5
      %v790 = vmul.f32 %v504, %v758
      %v791 = vmul.f32 %v509, %v759
      %v792 = vmul.f32 %v514, %v760
      %v793 = vmul.f32 %v519, %v761
      %v794 = vmul.f32 %v524, %v762
      %v795 = vmul.f32 %v529, %v763
      %v796 = vmul.f32 %v534, %v764
      %v797 = vmul.f32 %v539, %v765
      %v798 = vmul.f32 %v544, %v766
      %v799 = vmul.f32 %v549, %v767
      %v800 = vmul.f32 %v554, %v768
      %v801 = vmul.f32 %v559, %v769
      %v802 = vmul.f32 %v564, %v770
      %v803 = vmul.f32 %v569, %v771
      %v804 = vmul.f32 %v574, %v772
      %v805 = vmul.f32 %v579, %v773
      %v806 = vmul.f32 %v584, %v774
      %v807 = vmul.f32 %v589, %v775
      %v808 = vmul.f32 %v594, %v776
      %v809 = vmul.f32 %v599, %v777
      %v810 = vmul.f32 %v604, %v778
      %v811 = vmul.f32 %v609, %v779
      %v812 = vmul.f32 %v614, %v780
      %v813 = vmul.f32 %v619, %v781
      %v814 = vmul.f32 %v624, %v782
      %v815 = vmul.f32 %v629, %v783
      %v816 = vmul.f32 %v634, %v784
      %v817 = vmul.f32 %v639, %v785
      %v818 = vmul.f32 %v644, %v786
      %v819 = vmul.f32 %v649, %v787
      %v820 = vmul.f32 %v654, %v788
      %v821 = vmul.f32 %v659, %v789
      %p822 = scmp.eq.s32.totalorder %s22, 0
      %p823 = scmp.eq.s32.totalorder %s23, 0
      %p824 = pnand %p822, %p823
      %p825 = pneg %p824
      // Predicated region
      $region49: #{net_forward.1} parent=47 // pred_check
        _
      $region50: #{net_forward.1} parent=47 // pred_check_branch
        %827 = sbr.rel (%p824) target = $region52
      $region51: #{net_forward.1} parent=47 // pred_region
        %828 = vst [vmem:[#allocation2] sm:$0xff] 0.0
        %829 = vst [vmem:[#allocation3] sm:$0xff] 0.0
      $region52: #{net_forward.1} parent=47 // pred_fallthru
        _
      // Predicated region
      $region53: #{net_forward.1} parent=47 // pred_check
        %p830 = pneg %p822
      $region54: #{net_forward.1} parent=47 // pred_check_branch
        %832 = sbr.rel (%p830) target = $region56
      $region55: #{net_forward.1} parent=47 // pred_region
        %v833 = vld [vmem:[#allocation2] sm:$0xff]
        %v834 = vadd.f32 %v790, %v791
        %v835 = vadd.f32 %v834, %v792
        %v836 = vadd.f32 %v835, %v793
        %v837 = vadd.f32 %v836, %v794
        %v838 = vadd.f32 %v837, %v795
        %v839 = vadd.f32 %v838, %v796
        %v840 = vadd.f32 %v839, %v797
        %v841 = vadd.f32 %v840, %v798
        %v842 = vadd.f32 %v841, %v799
        %v843 = vadd.f32 %v842, %v800
        %v844 = vadd.f32 %v843, %v801
        %v845 = vadd.f32 %v844, %v802
        %v846 = vadd.f32 %v845, %v803
        %v847 = vadd.f32 %v846, %v804
        %v848 = vadd.f32 %v847, %v805
        %v849 = vadd.f32 %v848, %v806
        %v850 = vadd.f32 %v849, %v807
        %v851 = vadd.f32 %v850, %v808
        %v852 = vadd.f32 %v851, %v809
        %v853 = vadd.f32 %v852, %v810
        %v854 = vadd.f32 %v853, %v811
        %v855 = vadd.f32 %v854, %v812
        %v856 = vadd.f32 %v855, %v813
        %v857 = vadd.f32 %v856, %v814
        %v858 = vadd.f32 %v857, %v815
        %v859 = vadd.f32 %v858, %v816
        %v860 = vadd.f32 %v859, %v817
        %v861 = vadd.f32 %v860, %v818
        %v862 = vadd.f32 %v861, %v819
        %v863 = vadd.f32 %v862, %v820
        %v864 = vadd.f32 %v863, %v821
        %v865 = vadd.f32 %v833, %v864
        %866 = vst [vmem:[#allocation2] sm:$0xff] %v865
        %v867 = vld [vmem:[#allocation3] sm:$0xff]
        %v868 = vmul.f32 %v790, %v790
        %v869 = vmul.f32 %v791, %v791
        %v870 = vmul.f32 %v792, %v792
        %v871 = vmul.f32 %v793, %v793
        %v872 = vmul.f32 %v794, %v794
        %v873 = vmul.f32 %v795, %v795
        %v874 = vmul.f32 %v796, %v796
        %v875 = vmul.f32 %v797, %v797
        %v876 = vmul.f32 %v798, %v798
        %v877 = vmul.f32 %v799, %v799
        %v878 = vmul.f32 %v800, %v800
        %v879 = vmul.f32 %v801, %v801
        %v880 = vmul.f32 %v802, %v802
        %v881 = vmul.f32 %v803, %v803
        %v882 = vmul.f32 %v804, %v804
        %v883 = vmul.f32 %v805, %v805
        %v884 = vmul.f32 %v806, %v806
        %v885 = vmul.f32 %v807, %v807
        %v886 = vmul.f32 %v808, %v808
        %v887 = vmul.f32 %v809, %v809
        %v888 = vmul.f32 %v810, %v810
        %v889 = vmul.f32 %v811, %v811
        %v890 = vmul.f32 %v812, %v812
        %v891 = vmul.f32 %v813, %v813
        %v892 = vmul.f32 %v814, %v814
        %v893 = vmul.f32 %v815, %v815
        %v894 = vmul.f32 %v816, %v816
        %v895 = vmul.f32 %v817, %v817
        %v896 = vmul.f32 %v818, %v818
        %v897 = vmul.f32 %v819, %v819
        %v898 = vmul.f32 %v820, %v820
        %v899 = vmul.f32 %v821, %v821
        %v900 = vadd.f32 %v868, %v869
        %v901 = vadd.f32 %v900, %v870
        %v902 = vadd.f32 %v901, %v871
        %v903 = vadd.f32 %v902, %v872
        %v904 = vadd.f32 %v903, %v873
        %v905 = vadd.f32 %v904, %v874
        %v906 = vadd.f32 %v905, %v875
        %v907 = vadd.f32 %v906, %v876
        %v908 = vadd.f32 %v907, %v877
        %v909 = vadd.f32 %v908, %v878
        %v910 = vadd.f32 %v909, %v879
        %v911 = vadd.f32 %v910, %v880
        %v912 = vadd.f32 %v911, %v881
        %v913 = vadd.f32 %v912, %v882
        %v914 = vadd.f32 %v913, %v883
        %v915 = vadd.f32 %v914, %v884
        %v916 = vadd.f32 %v915, %v885
        %v917 = vadd.f32 %v916, %v886
        %v918 = vadd.f32 %v917, %v887
        %v919 = vadd.f32 %v918, %v888
        %v920 = vadd.f32 %v919, %v889
        %v921 = vadd.f32 %v920, %v890
        %v922 = vadd.f32 %v921, %v891
        %v923 = vadd.f32 %v922, %v892
        %v924 = vadd.f32 %v923, %v893
        %v925 = vadd.f32 %v924, %v894
        %v926 = vadd.f32 %v925, %v895
        %v927 = vadd.f32 %v926, %v896
        %v928 = vadd.f32 %v927, %v897
        %v929 = vadd.f32 %v928, %v898
        %v930 = vadd.f32 %v929, %v899
        %v931 = vadd.f32 %v867, %v930
        %932 = vst [vmem:[#allocation3] sm:$0xff] %v931
      $region56: #{net_forward.1} parent=47 // pred_fallthru
        _
      %p933 = scmp.eq.s32.totalorder %s22, 1
      %p934 = pnand %p933, %p823
      %p935 = pneg %p934
      // Predicated region
      $region57: #{net_forward.1} parent=47 // pred_check
        _
      $region58: #{net_forward.1} parent=47 // pred_check_branch
        %937 = sbr.rel (%p934) target = $region60
      $region59: #{net_forward.1} parent=47 // pred_region
        %v938 = vld [vmem:[#allocation2] sm:$0xff]
        %v939 = vrot.slane %v938, 4
        %v940 = vadd.f32 %v938, %v939
        %v941 = vrot.slane %v940, 2
        %v942 = vadd.f32 %v940, %v941
        %v943 = vrot.slane %v942, 1
        %v944 = vadd.f32 %v942, %v943
        %v945 = vmul.f32 %v944, 0.001953125
        %v946 = vld [vmem:[#allocation3] sm:$0xff]
        %v947 = vrot.slane %v946, 4
        %v948 = vadd.f32 %v946, %v947
        %v949 = vrot.slane %v948, 2
        %v950 = vadd.f32 %v948, %v949
        %v951 = vrot.slane %v950, 1
        %v952 = vadd.f32 %v950, %v951
        %v953 = vmul.f32 %v952, 0.001953125
        %v954 = vmul.f32 %v945, %v945
        %v955 = vsub.f32 %v953, %v954
        %v956 = vmax.f32 %v955, 0.0
        %v957 = vadd.f32 %v956, 1e-05
        %v958 = vrsqrt.pop %v957
        %v959 = vld [vmem:[%s3] sm:$0x1]
        %v960 = vmul.f32 %v959, %v958
        %961 = vst [vmem:[#allocation4] sm:$0x1] %v960
        %v962 = vld [vmem:[%s4] sm:$0x1]
        %v963 = vld [vmem:[%s3] sm:$0x1]
        %v964 = vmul.f32 %v945, %v963
        %v965 = vmul.f32 %v964, %v958
        %v966 = vsub.f32 %v962, %v965
        %967 = vst [vmem:[#allocation5] sm:$0x1] %v966
      $region60: #{net_forward.1} parent=47 // pred_fallthru
        _
      // Predicated region
      $region61: #{net_forward.1} parent=47 // pred_check
        %p968 = pneg %p933
      $region62: #{net_forward.1} parent=47 // pred_check_branch
        %970 = sbr.rel (%p968) target = $region64
      $region63: #{net_forward.1} parent=47 // pred_region
        %v971 = vld [vmem:[#allocation4] sm:$0x1]
        %v973 = vlaneseq
        %v974 = vshrl.u32 %v973, 7
        %v975 = vsub.s32 0, %v974
        %v976 = vrot.slane %v971, %v975
        %v978 = vmul.f32 %v790, %v976
        %v979 = vmul.f32 %v791, %v976
        %v980 = vmul.f32 %v792, %v976
        %v981 = vmul.f32 %v793, %v976
        %v982 = vmul.f32 %v794, %v976
        %v983 = vmul.f32 %v795, %v976
        %v984 = vmul.f32 %v796, %v976
        %v985 = vmul.f32 %v797, %v976
        %v986 = vmul.f32 %v798, %v976
        %v987 = vmul.f32 %v799, %v976
        %v988 = vmul.f32 %v800, %v976
        %v989 = vmul.f32 %v801, %v976
        %v990 = vmul.f32 %v802, %v976
        %v991 = vmul.f32 %v803, %v976
        %v992 = vmul.f32 %v804, %v976
        %v993 = vmul.f32 %v805, %v976
        %v994 = vmul.f32 %v806, %v976
        %v995 = vmul.f32 %v807, %v976
        %v996 = vmul.f32 %v808, %v976
        %v997 = vmul.f32 %v809, %v976
        %v998 = vmul.f32 %v810, %v976
        %v999 = vmul.f32 %v811, %v976
        %v1000 = vmul.f32 %v812, %v976
        %v1001 = vmul.f32 %v813, %v976
        %v1002 = vmul.f32 %v814, %v976
        %v1003 = vmul.f32 %v815, %v976
        %v1004 = vmul.f32 %v816, %v976
        %v1005 = vmul.f32 %v817, %v976
        %v1006 = vmul.f32 %v818, %v976
        %v1007 = vmul.f32 %v819, %v976
        %v1008 = vmul.f32 %v820, %v976
        %v1009 = vmul.f32 %v821, %v976
        %v1010 = vld [vmem:[#allocation5] sm:$0x1]
        %v1012 = vlaneseq
        %v1013 = vshrl.u32 %v1012, 7
        %v1014 = vsub.s32 0, %v1013
        %v1015 = vrot.slane %v1010, %v1014
        %v1017 = vadd.f32 %v978, %v1015
        %v1018 = vadd.f32 %v979, %v1015
        %v1019 = vadd.f32 %v980, %v1015
        %v1020 = vadd.f32 %v981, %v1015
        %v1021 = vadd.f32 %v982, %v1015
        %v1022 = vadd.f32 %v983, %v1015
        %v1023 = vadd.f32 %v984, %v1015
        %v1024 = vadd.f32 %v985, %v1015
        %v1025 = vadd.f32 %v986, %v1015
        %v1026 = vadd.f32 %v987, %v1015
        %v1027 = vadd.f32 %v988, %v1015
        %v1028 = vadd.f32 %v989, %v1015
        %v1029 = vadd.f32 %v990, %v1015
        %v1030 = vadd.f32 %v991, %v1015
        %v1031 = vadd.f32 %v992, %v1015
        %v1032 = vadd.f32 %v993, %v1015
        %v1033 = vadd.f32 %v994, %v1015
        %v1034 = vadd.f32 %v995, %v1015
        %v1035 = vadd.f32 %v996, %v1015
        %v1036 = vadd.f32 %v997, %v1015
        %v1037 = vadd.f32 %v998, %v1015
        %v1038 = vadd.f32 %v999, %v1015
        %v1039 = vadd.f32 %v1000, %v1015
        %v1040 = vadd.f32 %v1001, %v1015
        %v1041 = vadd.f32 %v1002, %v1015
        %v1042 = vadd.f32 %v1003, %v1015
        %v1043 = vadd.f32 %v1004, %v1015
        %v1044 = vadd.f32 %v1005, %v1015
        %v1045 = vadd.f32 %v1006, %v1015
        %v1046 = vadd.f32 %v1007, %v1015
        %v1047 = vadd.f32 %v1008, %v1015
        %v1048 = vadd.f32 %v1009, %v1015
        %v1049 = vld [vmem:[%s5] sm:$0xff]
        %v1050 = vld [vmem:[%s5 + $0x8] sm:$0xff]
        %v1051 = vld [vmem:[%s5 + $0x10] sm:$0xff]
        %v1052 = vld [vmem:[%s5 + $0x18] sm:$0xff]
        %v1053 = vld [vmem:[%s5 + $0x20] sm:$0xff]
        %v1054 = vld [vmem:[%s5 + $0x28] sm:$0xff]
        %v1055 = vld [vmem:[%s5 + $0x30] sm:$0xff]
        %v1056 = vld [vmem:[%s5 + $0x38] sm:$0xff]
        %v1057 = vld [vmem:[%s5 + $0x40] sm:$0xff]
        %v1058 = vld [vmem:[%s5 + $0x48] sm:$0xff]
        %v1059 = vld [vmem:[%s5 + $0x50] sm:$0xff]
        %v1060 = vld [vmem:[%s5 + $0x58] sm:$0xff]
        %v1061 = vld [vmem:[%s5 + $0x60] sm:$0xff]
        %v1062 = vld [vmem:[%s5 + $0x68] sm:$0xff]
        %v1063 = vld [vmem:[%s5 + $0x70] sm:$0xff]
        %v1064 = vld [vmem:[%s5 + $0x78] sm:$0xff]
        %v1065 = vld [vmem:[%s6] sm:$0x1]
        %v1067 = vlaneseq
        %v1068 = vshrl.u32 %v1067, 7
        %v1069 = vsub.s32 0, %v1068
        %v1070 = vrot.slane %v1065, %v1069
        %1072 = vmatprep.subr.mxu0 0.0
        %1073 = vmatpush1.msra.mxu0 %v1049
        %1074 = vmatprep.subr.mxu0 0.0
        %1075 = vmatpush1.msra.mxu0 %v1050
        %1076 = vmatprep.subr.mxu0 0.0
        %1077 = vmatpush1.msra.mxu0 %v1051
        %1078 = vmatprep.subr.mxu0 0.0
        %1079 = vmatpush1.msra.mxu0 %v1052
        %1080 = vmatprep.subr.mxu0 0.0
        %1081 = vmatpush1.msra.mxu0 %v1053
        %1082 = vmatprep.subr.mxu0 0.0
        %1083 = vmatpush1.msra.mxu0 %v1054
        %1084 = vmatprep.subr.mxu0 0.0
        %1085 = vmatpush1.msra.mxu0 %v1055
        %1086 = vmatprep.subr.mxu0 0.0
        %1087 = vmatpush1.msra.mxu0 %v1056
        %1088 = vmatprep.subr.mxu0 0.0
        %1089 = vmatpush1.msra.mxu0 %v1057
        %1090 = vmatprep.subr.mxu0 0.0
        %1091 = vmatpush1.msra.mxu0 %v1058
        %1092 = vmatprep.subr.mxu0 0.0
        %1093 = vmatpush1.msra.mxu0 %v1059
        %1094 = vmatprep.subr.mxu0 0.0
        %1095 = vmatpush1.msra.mxu0 %v1060
        %1096 = vmatprep.subr.mxu0 0.0
        %1097 = vmatpush1.msra.mxu0 %v1061
        %1098 = vmatprep.subr.mxu0 0.0
        %1099 = vmatpush1.msra.mxu0 %v1062
        %1100 = vmatprep.subr.mxu0 0.0
        %1101 = vmatpush1.msra.mxu0 %v1063
        %1102 = vmatprep.subr.mxu0 0.0
        %1103 = vmatpush1.msra.mxu0 %v1064
        %1104 = vmatprep.subr.mxu0 0.0
        %1105 = vmatpush1.msra.mxu0 0.0
        %1106 = vmatprep.subr.mxu0 0.0
        %1107 = vmatpush1.msra.mxu0 0.0
        %1108 = vmatprep.subr.mxu0 0.0
        %1109 = vmatpush1.msra.mxu0 0.0
        %1110 = vmatprep.subr.mxu0 0.0
        %1111 = vmatpush1.msra.mxu0 0.0
        %1112 = vmatprep.subr.mxu0 0.0
        %1113 = vmatpush1.msra.mxu0 0.0
        %1114 = vmatprep.subr.mxu0 0.0
        %1115 = vmatpush1.msra.mxu0 0.0
        %1116 = vmatprep.subr.mxu0 0.0
        %1117 = vmatpush1.msra.mxu0 0.0
        %1118 = vmatprep.subr.mxu0 0.0
        %1119 = vmatpush1.msra.mxu0 0.0
        %1120 = vmatprep.subr.mxu0 0.0
        %1121 = vmatpush1.msra.mxu0 0.0
        %1122 = vmatprep.subr.mxu0 0.0
        %1123 = vmatpush1.msra.mxu0 0.0
        %1124 = vmatprep.subr.mxu0 0.0
        %1125 = vmatpush1.msra.mxu0 0.0
        %1126 = vmatprep.subr.mxu0 0.0
        %1127 = vmatpush1.msra.mxu0 0.0
        %1128 = vmatprep.subr.mxu0 0.0
        %1129 = vmatpush1.msra.mxu0 0.0
        %1130 = vmatprep.subr.mxu0 0.0
        %1131 = vmatpush1.msra.mxu0 0.0
        %1132 = vmatprep.subr.mxu0 0.0
        %1133 = vmatpush1.msra.mxu0 0.0
        %1134 = vmatprep.subr.mxu0 0.0
        %1135 = vmatpush1.msra.mxu0 0.0
        %1136 = vmatprep.mubr.f32.mxu0 0.0
        %1137 = vmatmul.mubr.f32.gmra.mrb[0].mxu0 %v1017
        %v1138 = vpop.f32.mrb[0].mxu0
        %v1139 = vadd.f32 %v1070, %v1138
        %v1140 = vpop.f32.mrb[0].mxu0
        %1141 = vmatprep.mubr.f32.mxu0 0.0
        %1142 = vmatmul.mubr.f32.gmra.mrb[0].mxu0 %v1018
        %v1143 = vpop.f32.mrb[0].mxu0
        %v1144 = vadd.f32 %v1070, %v1143
        %v1145 = vpop.f32.mrb[0].mxu0
        %1146 = vmatprep.mubr.f32.mxu0 0.0
        %1147 = vmatmul.mubr.f32.gmra.mrb[0].mxu0 %v1019
        %v1148 = vpop.f32.mrb[0].mxu0
        %v1149 = vadd.f32 %v1070, %v1148
        %v1150 = vpop.f32.mrb[0].mxu0
        %1151 = vmatprep.mubr.f32.mxu0 0.0
        %1152 = vmatmul.mubr.f32.gmra.mrb[0].mxu0 %v1020
        %v1153 = vpop.f32.mrb[0].mxu0
        %v1154 = vadd.f32 %v1070, %v1153
        %v1155 = vpop.f32.mrb[0].mxu0
        %1156 = vmatprep.mubr.f32.mxu0 0.0
        %1157 = vmatmul.mubr.f32.gmra.mrb[0].mxu0 %v1021
        %v1158 = vpop.f32.mrb[0].mxu0
        %v1159 = vadd.f32 %v1070, %v1158
        %v1160 = vpop.f32.mrb[0].mxu0
        %1161 = vmatprep.mubr.f32.mxu0 0.0
        %1162 = vmatmul.mubr.f32.gmra.mrb[0].mxu0 %v1022
        %v1163 = vpop.f32.mrb[0].mxu0
        %v1164 = vadd.f32 %v1070, %v1163
        %v1165 = vpop.f32.mrb[0].mxu0
        %1166 = vmatprep.mubr.f32.mxu0 0.0
        %1167 = vmatmul.mubr.f32.gmra.mrb[0].mxu0 %v1023
        %v1168 = vpop.f32.mrb[0].mxu0
        %v1169 = vadd.f32 %v1070, %v1168
        %v1170 = vpop.f32.mrb[0].mxu0
        %1171 = vmatprep.mubr.f32.mxu0 0.0
        %1172 = vmatmul.mubr.f32.gmra.mrb[0].mxu0 %v1024
        %v1173 = vpop.f32.mrb[0].mxu0
        %v1174 = vadd.f32 %v1070, %v1173
        %v1175 = vpop.f32.mrb[0].mxu0
        %1176 = vmatprep.mubr.f32.mxu0 0.0
        %1177 = vmatmul.mubr.f32.gmra.mrb[0].mxu0 %v1025
        %v1178 = vpop.f32.mrb[0].mxu0
        %v1179 = vadd.f32 %v1070, %v1178
        %v1180 = vpop.f32.mrb[0].mxu0
        %1181 = vmatprep.mubr.f32.mxu0 0.0
        %1182 = vmatmul.mubr.f32.gmra.mrb[0].mxu0 %v1026
        %v1183 = vpop.f32.mrb[0].mxu0
        %v1184 = vadd.f32 %v1070, %v1183
        %v1185 = vpop.f32.mrb[0].mxu0
        %1186 = vmatprep.mubr.f32.mxu0 0.0
        %1187 = vmatmul.mubr.f32.gmra.mrb[0].mxu0 %v1027
        %v1188 = vpop.f32.mrb[0].mxu0
        %v1189 = vadd.f32 %v1070, %v1188
        %v1190 = vpop.f32.mrb[0].mxu0
        %1191 = vmatprep.mubr.f32.mxu0 0.0
        %1192 = vmatmul.mubr.f32.gmra.mrb[0].mxu0 %v1028
        %v1193 = vpop.f32.mrb[0].mxu0
        %v1194 = vadd.f32 %v1070, %v1193
        %v1195 = vpop.f32.mrb[0].mxu0
        %1196 = vmatprep.mubr.f32.mxu0 0.0
        %1197 = vmatmul.mubr.f32.gmra.mrb[0].mxu0 %v1029
        %v1198 = vpop.f32.mrb[0].mxu0
        %v1199 = vadd.f32 %v1070, %v1198
        %v1200 = vpop.f32.mrb[0].mxu0
        %1201 = vmatprep.mubr.f32.mxu0 0.0
        %1202 = vmatmul.mubr.f32.gmra.mrb[0].mxu0 %v1030
        %v1203 = vpop.f32.mrb[0].mxu0
        %v1204 = vadd.f32 %v1070, %v1203
        %v1205 = vpop.f32.mrb[0].mxu0
        %1206 = vmatprep.mubr.f32.mxu0 0.0
        %1207 = vmatmul.mubr.f32.gmra.mrb[0].mxu0 %v1031
        %v1208 = vpop.f32.mrb[0].mxu0
        %v1209 = vadd.f32 %v1070, %v1208
        %v1210 = vpop.f32.mrb[0].mxu0
        %1211 = vmatprep.mubr.f32.mxu0 0.0
        %1212 = vmatmul.mubr.f32.gmra.mrb[0].mxu0 %v1032
        %v1213 = vpop.f32.mrb[0].mxu0
        %v1214 = vadd.f32 %v1070, %v1213
        %v1215 = vpop.f32.mrb[0].mxu0
        %1216 = vmatprep.mubr.f32.mxu0 0.0
        %1217 = vmatmul.mubr.f32.gmra.mrb[0].mxu0 %v1033
        %v1218 = vpop.f32.mrb[0].mxu0
        %v1219 = vadd.f32 %v1070, %v1218
        %v1220 = vpop.f32.mrb[0].mxu0
        %1221 = vmatprep.mubr.f32.mxu0 0.0
        %1222 = vmatmul.mubr.f32.gmra.mrb[0].mxu0 %v1034
        %v1223 = vpop.f32.mrb[0].mxu0
        %v1224 = vadd.f32 %v1070, %v1223
        %v1225 = vpop.f32.mrb[0].mxu0
        %1226 = vmatprep.mubr.f32.mxu0 0.0
        %1227 = vmatmul.mubr.f32.gmra.mrb[0].mxu0 %v1035
        %v1228 = vpop.f32.mrb[0].mxu0
        %v1229 = vadd.f32 %v1070, %v1228
        %v1230 = vpop.f32.mrb[0].mxu0
        %1231 = vmatprep.mubr.f32.mxu0 0.0
        %1232 = vmatmul.mubr.f32.gmra.mrb[0].mxu0 %v1036
        %v1233 = vpop.f32.mrb[0].mxu0
        %v1234 = vadd.f32 %v1070, %v1233
        %v1235 = vpop.f32.mrb[0].mxu0
        %1236 = vmatprep.mubr.f32.mxu0 0.0
        %1237 = vmatmul.mubr.f32.gmra.mrb[0].mxu0 %v1037
        %v1238 = vpop.f32.mrb[0].mxu0
        %v1239 = vadd.f32 %v1070, %v1238
        %v1240 = vpop.f32.mrb[0].mxu0
        %1241 = vmatprep.mubr.f32.mxu0 0.0
        %1242 = vmatmul.mubr.f32.gmra.mrb[0].mxu0 %v1038
        %v1243 = vpop.f32.mrb[0].mxu0
        %v1244 = vadd.f32 %v1070, %v1243
        %v1245 = vpop.f32.mrb[0].mxu0
        %1246 = vmatprep.mubr.f32.mxu0 0.0
        %1247 = vmatmul.mubr.f32.gmra.mrb[0].mxu0 %v1039
        %v1248 = vpop.f32.mrb[0].mxu0
        %v1249 = vadd.f32 %v1070, %v1248
        %v1250 = vpop.f32.mrb[0].mxu0
        %1251 = vmatprep.mubr.f32.mxu0 0.0
        %1252 = vmatmul.mubr.f32.gmra.mrb[0].mxu0 %v1040
        %v1253 = vpop.f32.mrb[0].mxu0
        %v1254 = vadd.f32 %v1070, %v1253
        %v1255 = vpop.f32.mrb[0].mxu0
        %1256 = vmatprep.mubr.f32.mxu0 0.0
        %1257 = vmatmul.mubr.f32.gmra.mrb[0].mxu0 %v1041
        %v1258 = vpop.f32.mrb[0].mxu0
        %v1259 = vadd.f32 %v1070, %v1258
        %v1260 = vpop.f32.mrb[0].mxu0
        %1261 = vmatprep.mubr.f32.mxu0 0.0
        %1262 = vmatmul.mubr.f32.gmra.mrb[0].mxu0 %v1042
        %v1263 = vpop.f32.mrb[0].mxu0
        %v1264 = vadd.f32 %v1070, %v1263
        %v1265 = vpop.f32.mrb[0].mxu0
        %1266 = vmatprep.mubr.f32.mxu0 0.0
        %1267 = vmatmul.mubr.f32.gmra.mrb[0].mxu0 %v1043
        %v1268 = vpop.f32.mrb[0].mxu0
        %v1269 = vadd.f32 %v1070, %v1268
        %v1270 = vpop.f32.mrb[0].mxu0
        %1271 = vmatprep.mubr.f32.mxu0 0.0
        %1272 = vmatmul.mubr.f32.gmra.mrb[0].mxu0 %v1044
        %v1273 = vpop.f32.mrb[0].mxu0
        %v1274 = vadd.f32 %v1070, %v1273
        %v1275 = vpop.f32.mrb[0].mxu0
        %1276 = vmatprep.mubr.f32.mxu0 0.0
        %1277 = vmatmul.mubr.f32.gmra.mrb[0].mxu0 %v1045
        %v1278 = vpop.f32.mrb[0].mxu0
        %v1279 = vadd.f32 %v1070, %v1278
        %v1280 = vpop.f32.mrb[0].mxu0
        %1281 = vmatprep.mubr.f32.mxu0 0.0
        %1282 = vmatmul.mubr.f32.gmra.mrb[0].mxu0 %v1046
        %v1283 = vpop.f32.mrb[0].mxu0
        %v1284 = vadd.f32 %v1070, %v1283
        %v1285 = vpop.f32.mrb[0].mxu0
        %1286 = vmatprep.mubr.f32.mxu0 0.0
        %1287 = vmatmul.mubr.f32.gmra.mrb[0].mxu0 %v1047
        %v1288 = vpop.f32.mrb[0].mxu0
        %v1289 = vadd.f32 %v1070, %v1288
        %v1290 = vpop.f32.mrb[0].mxu0
        %1291 = vmatprep.mubr.f32.mxu0 0.0
        %1292 = vmatmul.mubr.f32.gmra.mrb[0].mxu0 %v1048
        %v1293 = vpop.f32.mrb[0].mxu0
        %v1294 = vadd.f32 %v1070, %v1293
        %v1295 = vpop.f32.mrb[0].mxu0
        %1296 = vdwg.mxu0
        %vm1297 = vcmask 64512
        %v1298 = vsel %vm1297, %v1139, -inf
        %1299 = vmax.xlane.f32.xlu0 %v1298
        %v1300 = vpop.xlane.xlu0 %1299
        %v1301 = vsel %vm1297, %v1144, -inf
        %1302 = vmax.xlane.f32.xlu0 %v1301
        %v1303 = vpop.xlane.xlu0 %1302
        %v1304 = vsel %vm1297, %v1149, -inf
        %1305 = vmax.xlane.f32.xlu0 %v1304
        %v1306 = vpop.xlane.xlu0 %1305
        %v1307 = vsel %vm1297, %v1154, -inf
        %1308 = vmax.xlane.f32.xlu0 %v1307
        %v1309 = vpop.xlane.xlu0 %1308
        %v1310 = vsel %vm1297, %v1159, -inf
        %1311 = vmax.xlane.f32.xlu0 %v1310
        %v1312 = vpop.xlane.xlu0 %1311
        %v1313 = vsel %vm1297, %v1164, -inf
        %1314 = vmax.xlane.f32.xlu0 %v1313
        %v1315 = vpop.xlane.xlu0 %1314
        %v1316 = vsel %vm1297, %v1169, -inf
        %1317 = vmax.xlane.f32.xlu0 %v1316
        %v1318 = vpop.xlane.xlu0 %1317
        %v1319 = vsel %vm1297, %v1174, -inf
        %1320 = vmax.xlane.f32.xlu0 %v1319
        %v1321 = vpop.xlane.xlu0 %1320
        %v1322 = vsel %vm1297, %v1179, -inf
        %1323 = vmax.xlane.f32.xlu0 %v1322
        %v1324 = vpop.xlane.xlu0 %1323
        %v1325 = vsel %vm1297, %v1184, -inf
        %1326 = vmax.xlane.f32.xlu0 %v1325
        %v1327 = vpop.xlane.xlu0 %1326
        %v1328 = vsel %vm1297, %v1189, -inf
        %1329 = vmax.xlane.f32.xlu0 %v1328
        %v1330 = vpop.xlane.xlu0 %1329
        %v1331 = vsel %vm1297, %v1194, -inf
        %1332 = vmax.xlane.f32.xlu0 %v1331
        %v1333 = vpop.xlane.xlu0 %1332
        %v1334 = vsel %vm1297, %v1199, -inf
        %1335 = vmax.xlane.f32.xlu0 %v1334
        %v1336 = vpop.xlane.xlu0 %1335
        %v1337 = vsel %vm1297, %v1204, -inf
        %1338 = vmax.xlane.f32.xlu0 %v1337
        %v1339 = vpop.xlane.xlu0 %1338
        %v1340 = vsel %vm1297, %v1209, -inf
        %1341 = vmax.xlane.f32.xlu0 %v1340
        %v1342 = vpop.xlane.xlu0 %1341
        %v1343 = vsel %vm1297, %v1214, -inf
        %1344 = vmax.xlane.f32.xlu0 %v1343
        %v1345 = vpop.xlane.xlu0 %1344
        %v1346 = vsel %vm1297, %v1219, -inf
        %1347 = vmax.xlane.f32.xlu0 %v1346
        %v1348 = vpop.xlane.xlu0 %1347
        %v1349 = vsel %vm1297, %v1224, -inf
        %1350 = vmax.xlane.f32.xlu0 %v1349
        %v1351 = vpop.xlane.xlu0 %1350
        %v1352 = vsel %vm1297, %v1229, -inf
        %1353 = vmax.xlane.f32.xlu0 %v1352
        %v1354 = vpop.xlane.xlu0 %1353
        %v1355 = vsel %vm1297, %v1234, -inf
        %1356 = vmax.xlane.f32.xlu0 %v1355
        %v1357 = vpop.xlane.xlu0 %1356
        %v1358 = vsel %vm1297, %v1239, -inf
        %1359 = vmax.xlane.f32.xlu0 %v1358
        %v1360 = vpop.xlane.xlu0 %1359
        %v1361 = vsel %vm1297, %v1244, -inf
        %1362 = vmax.xlane.f32.xlu0 %v1361
        %v1363 = vpop.xlane.xlu0 %1362
        %v1364 = vsel %vm1297, %v1249, -inf
        %1365 = vmax.xlane.f32.xlu0 %v1364
        %v1366 = vpop.xlane.xlu0 %1365
        %v1367 = vsel %vm1297, %v1254, -inf
        %1368 = vmax.xlane.f32.xlu0 %v1367
        %v1369 = vpop.xlane.xlu0 %1368
        %v1370 = vsel %vm1297, %v1259, -inf
        %1371 = vmax.xlane.f32.xlu0 %v1370
        %v1372 = vpop.xlane.xlu0 %1371
        %v1373 = vsel %vm1297, %v1264, -inf
        %1374 = vmax.xlane.f32.xlu0 %v1373
        %v1375 = vpop.xlane.xlu0 %1374
        %v1376 = vsel %vm1297, %v1269, -inf
        %1377 = vmax.xlane.f32.xlu0 %v1376
        %v1378 = vpop.xlane.xlu0 %1377
        %v1379 = vsel %vm1297, %v1274, -inf
        %1380 = vmax.xlane.f32.xlu0 %v1379
        %v1381 = vpop.xlane.xlu0 %1380
        %v1382 = vsel %vm1297, %v1279, -inf
        %1383 = vmax.xlane.f32.xlu0 %v1382
        %v1384 = vpop.xlane.xlu0 %1383
        %v1385 = vsel %vm1297, %v1284, -inf
        %1386 = vmax.xlane.f32.xlu0 %v1385
        %v1387 = vpop.xlane.xlu0 %1386
        %v1388 = vsel %vm1297, %v1289, -inf
        %1389 = vmax.xlane.f32.xlu0 %v1388
        %v1390 = vpop.xlane.xlu0 %1389
        %v1391 = vsel %vm1297, %v1294, -inf
        %1392 = vmax.xlane.f32.xlu0 %v1391
        %v1393 = vpop.xlane.xlu0 %1392
        %v1394 = vsub.f32 %v1139, %v1300
        %v1395 = vsub.f32 %v1144, %v1303
        %v1396 = vsub.f32 %v1149, %v1306
        %v1397 = vsub.f32 %v1154, %v1309
        %v1398 = vsub.f32 %v1159, %v1312
        %v1399 = vsub.f32 %v1164, %v1315
        %v1400 = vsub.f32 %v1169, %v1318
        %v1401 = vsub.f32 %v1174, %v1321
        %v1402 = vsub.f32 %v1179, %v1324
        %v1403 = vsub.f32 %v1184, %v1327
        %v1404 = vsub.f32 %v1189, %v1330
        %v1405 = vsub.f32 %v1194, %v1333
        %v1406 = vsub.f32 %v1199, %v1336
        %v1407 = vsub.f32 %v1204, %v1339
        %v1408 = vsub.f32 %v1209, %v1342
        %v1409 = vsub.f32 %v1214, %v1345
        %v1410 = vsub.f32 %v1219, %v1348
        %v1411 = vsub.f32 %v1224, %v1351
        %v1412 = vsub.f32 %v1229, %v1354
        %v1413 = vsub.f32 %v1234, %v1357
        %v1414 = vsub.f32 %v1239, %v1360
        %v1415 = vsub.f32 %v1244, %v1363
        %v1416 = vsub.f32 %v1249, %v1366
        %v1417 = vsub.f32 %v1254, %v1369
        %v1418 = vsub.f32 %v1259, %v1372
        %v1419 = vsub.f32 %v1264, %v1375
        %v1420 = vsub.f32 %v1269, %v1378
        %v1421 = vsub.f32 %v1274, %v1381
        %v1422 = vsub.f32 %v1279, %v1384
        %v1423 = vsub.f32 %v1284, %v1387
        %v1424 = vsub.f32 %v1289, %v1390
        %v1425 = vsub.f32 %v1294, %v1393
        %v1426 = vmul.f32 %v1394, 1.442695
        %v1427 = vpow.pop %v1426
        %v1428 = vmul.f32 %v1395, 1.442695
        %v1429 = vpow.pop %v1428
        %v1430 = vmul.f32 %v1396, 1.442695
        %v1431 = vpow.pop %v1430
        %v1432 = vmul.f32 %v1397, 1.442695
        %v1433 = vpow.pop %v1432
        %v1434 = vmul.f32 %v1398, 1.442695
        %v1435 = vpow.pop %v1434
        %v1436 = vmul.f32 %v1399, 1.442695
        %v1437 = vpow.pop %v1436
        %v1438 = vmul.f32 %v1400, 1.442695
        %v1439 = vpow.pop %v1438
        %v1440 = vmul.f32 %v1401, 1.442695
        %v1441 = vpow.pop %v1440
        %v1442 = vmul.f32 %v1402, 1.442695
        %v1443 = vpow.pop %v1442
        %v1444 = vmul.f32 %v1403, 1.442695
        %v1445 = vpow.pop %v1444
        %v1446 = vmul.f32 %v1404, 1.442695
        %v1447 = vpow.pop %v1446
        %v1448 = vmul.f32 %v1405, 1.442695
        %v1449 = vpow.pop %v1448
        %v1450 = vmul.f32 %v1406, 1.442695
        %v1451 = vpow.pop %v1450
        %v1452 = vmul.f32 %v1407, 1.442695
        %v1453 = vpow.pop %v1452
        %v1454 = vmul.f32 %v1408, 1.442695
        %v1455 = vpow.pop %v1454
        %v1456 = vmul.f32 %v1409, 1.442695
        %v1457 = vpow.pop %v1456
        %v1458 = vmul.f32 %v1410, 1.442695
        %v1459 = vpow.pop %v1458
        %v1460 = vmul.f32 %v1411, 1.442695
        %v1461 = vpow.pop %v1460
        %v1462 = vmul.f32 %v1412, 1.442695
        %v1463 = vpow.pop %v1462
        %v1464 = vmul.f32 %v1413, 1.442695
        %v1465 = vpow.pop %v1464
        %v1466 = vmul.f32 %v1414, 1.442695
        %v1467 = vpow.pop %v1466
        %v1468 = vmul.f32 %v1415, 1.442695
        %v1469 = vpow.pop %v1468
        %v1470 = vmul.f32 %v1416, 1.442695
        %v1471 = vpow.pop %v1470
        %v1472 = vmul.f32 %v1417, 1.442695
        %v1473 = vpow.pop %v1472
        %v1474 = vmul.f32 %v1418, 1.442695
        %v1475 = vpow.pop %v1474
        %v1476 = vmul.f32 %v1419, 1.442695
        %v1477 = vpow.pop %v1476
        %v1478 = vmul.f32 %v1420, 1.442695
        %v1479 = vpow.pop %v1478
        %v1480 = vmul.f32 %v1421, 1.442695
        %v1481 = vpow.pop %v1480
        %v1482 = vmul.f32 %v1422, 1.442695
        %v1483 = vpow.pop %v1482
        %v1484 = vmul.f32 %v1423, 1.442695
        %v1485 = vpow.pop %v1484
        %v1486 = vmul.f32 %v1424, 1.442695
        %v1487 = vpow.pop %v1486
        %v1488 = vmul.f32 %v1425, 1.442695
        %v1489 = vpow.pop %v1488
        %v1490 = vsel %vm1297, %v1427, 0.0
        %1491 = vadd.xlane.f32.xlu0 %v1490
        %v1492 = vpop.xlane.xlu0 %1491
        %v1493 = vsel %vm1297, %v1429, 0.0
        %1494 = vadd.xlane.f32.xlu0 %v1493
        %v1495 = vpop.xlane.xlu0 %1494
        %v1496 = vsel %vm1297, %v1431, 0.0
        %1497 = vadd.xlane.f32.xlu0 %v1496
        %v1498 = vpop.xlane.xlu0 %1497
        %v1499 = vsel %vm1297, %v1433, 0.0
        %1500 = vadd.xlane.f32.xlu0 %v1499
        %v1501 = vpop.xlane.xlu0 %1500
        %v1502 = vsel %vm1297, %v1435, 0.0
        %1503 = vadd.xlane.f32.xlu0 %v1502
        %v1504 = vpop.xlane.xlu0 %1503
        %v1505 = vsel %vm1297, %v1437, 0.0
        %1506 = vadd.xlane.f32.xlu0 %v1505
        %v1507 = vpop.xlane.xlu0 %1506
        %v1508 = vsel %vm1297, %v1439, 0.0
        %1509 = vadd.xlane.f32.xlu0 %v1508
        %v1510 = vpop.xlane.xlu0 %1509
        %v1511 = vsel %vm1297, %v1441, 0.0
        %1512 = vadd.xlane.f32.xlu0 %v1511
        %v1513 = vpop.xlane.xlu0 %1512
        %v1514 = vsel %vm1297, %v1443, 0.0
        %1515 = vadd.xlane.f32.xlu0 %v1514
        %v1516 = vpop.xlane.xlu0 %1515
        %v1517 = vsel %vm1297, %v1445, 0.0
        %1518 = vadd.xlane.f32.xlu0 %v1517
        %v1519 = vpop.xlane.xlu0 %1518
        %v1520 = vsel %vm1297, %v1447, 0.0
        %1521 = vadd.xlane.f32.xlu0 %v1520
        %v1522 = vpop.xlane.xlu0 %1521
        %v1523 = vsel %vm1297, %v1449, 0.0
        %1524 = vadd.xlane.f32.xlu0 %v1523
        %v1525 = vpop.xlane.xlu0 %1524
        %v1526 = vsel %vm1297, %v1451, 0.0
        %1527 = vadd.xlane.f32.xlu0 %v1526
        %v1528 = vpop.xlane.xlu0 %1527
        %v1529 = vsel %vm1297, %v1453, 0.0
        %1530 = vadd.xlane.f32.xlu0 %v1529
        %v1531 = vpop.xlane.xlu0 %1530
        %v1532 = vsel %vm1297, %v1455, 0.0
        %1533 = vadd.xlane.f32.xlu0 %v1532
        %v1534 = vpop.xlane.xlu0 %1533
        %v1535 = vsel %vm1297, %v1457, 0.0
        %1536 = vadd.xlane.f32.xlu0 %v1535
        %v1537 = vpop.xlane.xlu0 %1536
        %v1538 = vsel %vm1297, %v1459, 0.0
        %1539 = vadd.xlane.f32.xlu0 %v1538
        %v1540 = vpop.xlane.xlu0 %1539
        %v1541 = vsel %vm1297, %v1461, 0.0
        %1542 = vadd.xlane.f32.xlu0 %v1541
        %v1543 = vpop.xlane.xlu0 %1542
        %v1544 = vsel %vm1297, %v1463, 0.0
        %1545 = vadd.xlane.f32.xlu0 %v1544
        %v1546 = vpop.xlane.xlu0 %1545
        %v1547 = vsel %vm1297, %v1465, 0.0
        %1548 = vadd.xlane.f32.xlu0 %v1547
        %v1549 = vpop.xlane.xlu0 %1548
        %v1550 = vsel %vm1297, %v1467, 0.0
        %1551 = vadd.xlane.f32.xlu0 %v1550
        %v1552 = vpop.xlane.xlu0 %1551
        %v1553 = vsel %vm1297, %v1469, 0.0
        %1554 = vadd.xlane.f32.xlu0 %v1553
        %v1555 = vpop.xlane.xlu0 %1554
        %v1556 = vsel %vm1297, %v1471, 0.0
        %1557 = vadd.xlane.f32.xlu0 %v1556
        %v1558 = vpop.xlane.xlu0 %1557
        %v1559 = vsel %vm1297, %v1473, 0.0
        %1560 = vadd.xlane.f32.xlu0 %v1559
        %v1561 = vpop.xlane.xlu0 %1560
        %v1562 = vsel %vm1297, %v1475, 0.0
        %1563 = vadd.xlane.f32.xlu0 %v1562
        %v1564 = vpop.xlane.xlu0 %1563
        %v1565 = vsel %vm1297, %v1477, 0.0
        %1566 = vadd.xlane.f32.xlu0 %v1565
        %v1567 = vpop.xlane.xlu0 %1566
        %v1568 = vsel %vm1297, %v1479, 0.0
        %1569 = vadd.xlane.f32.xlu0 %v1568
        %v1570 = vpop.xlane.xlu0 %1569
        %v1571 = vsel %vm1297, %v1481, 0.0
        %1572 = vadd.xlane.f32.xlu0 %v1571
        %v1573 = vpop.xlane.xlu0 %1572
        %v1574 = vsel %vm1297, %v1483, 0.0
        %1575 = vadd.xlane.f32.xlu0 %v1574
        %v1576 = vpop.xlane.xlu0 %1575
        %v1577 = vsel %vm1297, %v1485, 0.0
        %1578 = vadd.xlane.f32.xlu0 %v1577
        %v1579 = vpop.xlane.xlu0 %1578
        %v1580 = vsel %vm1297, %v1487, 0.0
        %1581 = vadd.xlane.f32.xlu0 %v1580
        %v1582 = vpop.xlane.xlu0 %1581
        %v1583 = vsel %vm1297, %v1489, 0.0
        %1584 = vadd.xlane.f32.xlu0 %v1583
        %v1585 = vpop.xlane.xlu0 %1584
        %v1586 = vrcp.pop %v1492
        %v1587 = vmul.f32 %v1427, %v1586
        %v1588 = vrcp.pop %v1495
        %v1589 = vmul.f32 %v1429, %v1588
        %v1590 = vrcp.pop %v1498
        %v1591 = vmul.f32 %v1431, %v1590
        %v1592 = vrcp.pop %v1501
        %v1593 = vmul.f32 %v1433, %v1592
        %v1594 = vrcp.pop %v1504
        %v1595 = vmul.f32 %v1435, %v1594
        %v1596 = vrcp.pop %v1507
        %v1597 = vmul.f32 %v1437, %v1596
        %v1598 = vrcp.pop %v1510
        %v1599 = vmul.f32 %v1439, %v1598
        %v1600 = vrcp.pop %v1513
        %v1601 = vmul.f32 %v1441, %v1600
        %v1602 = vrcp.pop %v1516
        %v1603 = vmul.f32 %v1443, %v1602
        %v1604 = vrcp.pop %v1519
        %v1605 = vmul.f32 %v1445, %v1604
        %v1606 = vrcp.pop %v1522
        %v1607 = vmul.f32 %v1447, %v1606
        %v1608 = vrcp.pop %v1525
        %v1609 = vmul.f32 %v1449, %v1608
        %v1610 = vrcp.pop %v1528
        %v1611 = vmul.f32 %v1451, %v1610
        %v1612 = vrcp.pop %v1531
        %v1613 = vmul.f32 %v1453, %v1612
        %v1614 = vrcp.pop %v1534
        %v1615 = vmul.f32 %v1455, %v1614
        %v1616 = vrcp.pop %v1537
        %v1617 = vmul.f32 %v1457, %v1616
        %v1618 = vrcp.pop %v1540
        %v1619 = vmul.f32 %v1459, %v1618
        %v1620 = vrcp.pop %v1543
        %v1621 = vmul.f32 %v1461, %v1620
        %v1622 = vrcp.pop %v1546
        %v1623 = vmul.f32 %v1463, %v1622
        %v1624 = vrcp.pop %v1549
        %v1625 = vmul.f32 %v1465, %v1624
        %v1626 = vrcp.pop %v1552
        %v1627 = vmul.f32 %v1467, %v1626
        %v1628 = vrcp.pop %v1555
        %v1629 = vmul.f32 %v1469, %v1628
        %v1630 = vrcp.pop %v1558
        %v1631 = vmul.f32 %v1471, %v1630
        %v1632 = vrcp.pop %v1561
        %v1633 = vmul.f32 %v1473, %v1632
        %v1634 = vrcp.pop %v1564
        %v1635 = vmul.f32 %v1475, %v1634
        %v1636 = vrcp.pop %v1567
        %v1637 = vmul.f32 %v1477, %v1636
        %v1638 = vrcp.pop %v1570
        %v1639 = vmul.f32 %v1479, %v1638
        %v1640 = vrcp.pop %v1573
        %v1641 = vmul.f32 %v1481, %v1640
        %v1642 = vrcp.pop %v1576
        %v1643 = vmul.f32 %v1483, %v1642
        %v1644 = vrcp.pop %v1579
        %v1645 = vmul.f32 %v1485, %v1644
        %v1646 = vrcp.pop %v1582
        %v1647 = vmul.f32 %v1487, %v1646
        %v1648 = vrcp.pop %v1585
        %v1649 = vmul.f32 %v1489, %v1648
        %1650 = vst.msk [vmem:[%s296] sm:$0xff] %vm1297, %v1587
        %1651 = vst.msk [vmem:[%s296 + $0x8] sm:$0xff] %vm1297, %v1589
        %1652 = vst.msk [vmem:[%s296 + $0x10] sm:$0xff] %vm1297, %v1591
        %1653 = vst.msk [vmem:[%s296 + $0x18] sm:$0xff] %vm1297, %v1593
        %1654 = vst.msk [vmem:[%s296 + $0x20] sm:$0xff] %vm1297, %v1595
        %1655 = vst.msk [vmem:[%s296 + $0x28] sm:$0xff] %vm1297, %v1597
        %1656 = vst.msk [vmem:[%s296 + $0x30] sm:$0xff] %vm1297, %v1599
        %1657 = vst.msk [vmem:[%s296 + $0x38] sm:$0xff] %vm1297, %v1601
        %1658 = vst.msk [vmem:[%s296 + $0x40] sm:$0xff] %vm1297, %v1603
        %1659 = vst.msk [vmem:[%s296 + $0x48] sm:$0xff] %vm1297, %v1605
        %1660 = vst.msk [vmem:[%s296 + $0x50] sm:$0xff] %vm1297, %v1607
        %1661 = vst.msk [vmem:[%s296 + $0x58] sm:$0xff] %vm1297, %v1609
        %1662 = vst.msk [vmem:[%s296 + $0x60] sm:$0xff] %vm1297, %v1611
        %1663 = vst.msk [vmem:[%s296 + $0x68] sm:$0xff] %vm1297, %v1613
        %1664 = vst.msk [vmem:[%s296 + $0x70] sm:$0xff] %vm1297, %v1615
        %1665 = vst.msk [vmem:[%s296 + $0x78] sm:$0xff] %vm1297, %v1617
        %1666 = vst.msk [vmem:[%s296 + $0x80] sm:$0xff] %vm1297, %v1619
        %1667 = vst.msk [vmem:[%s296 + $0x88] sm:$0xff] %vm1297, %v1621
        %1668 = vst.msk [vmem:[%s296 + $0x90] sm:$0xff] %vm1297, %v1623
        %1669 = vst.msk [vmem:[%s296 + $0x98] sm:$0xff] %vm1297, %v1625
        %1670 = vst.msk [vmem:[%s296 + $0xa0] sm:$0xff] %vm1297, %v1627
        %1671 = vst.msk [vmem:[%s296 + $0xa8] sm:$0xff] %vm1297, %v1629
        %1672 = vst.msk [vmem:[%s296 + $0xb0] sm:$0xff] %vm1297, %v1631
        %1673 = vst.msk [vmem:[%s296 + $0xb8] sm:$0xff] %vm1297, %v1633
        %1674 = vst.msk [vmem:[%s296 + $0xc0] sm:$0xff] %vm1297, %v1635
        %1675 = vst.msk [vmem:[%s296 + $0xc8] sm:$0xff] %vm1297, %v1637
        %1676 = vst.msk [vmem:[%s296 + $0xd0] sm:$0xff] %vm1297, %v1639
        %1677 = vst.msk [vmem:[%s296 + $0xd8] sm:$0xff] %vm1297, %v1641
        %1678 = vst.msk [vmem:[%s296 + $0xe0] sm:$0xff] %vm1297, %v1643
        %1679 = vst.msk [vmem:[%s296 + $0xe8] sm:$0xff] %vm1297, %v1645
        %1680 = vst.msk [vmem:[%s296 + $0xf0] sm:$0xff] %vm1297, %v1647
        %1681 = vst.msk [vmem:[%s296 + $0xf8] sm:$0xff] %vm1297, %v1649
      $region64: #{net_forward.1} parent=47 // pred_fallthru
        _
      %s1682 = smul.u32 %s22, %s23
      %s1683 = smul.u32 32, %s1682
      %p1684 = scmp.lt.s32.totalorder %s1683, 63
      %s1685 = scalar_select %p1684, %s1683, 63
      %s1686 = smul.addr %s1685, 8
      %s1687 = scalar_lea.vmem %s7, %s1686
      // Predicated region
      $region65: #{net_forward.1} parent=47 // pred_check
        %p1688 = pneg %p202
      $region66: #{net_forward.1} parent=47 // pred_check_branch
        %1690 = sbr.rel (%p1688) target = $region68
      $region67: #{net_forward.1} parent=47 // pred_region
        %s1691 = smul.u32 %s22, %s23
        %s1692 = smul.u32 32, %s1691
      $region68: #{net_forward.1} parent=47 // pred_fallthru
        _
    $region48: #{net_forward.1} parent=5 // pred_fallthru
      _
    %p1693 = scmp.le.s32.totalorder 2, %s13
    // Predicated region
    $region69: #{net_forward.1} parent=5 // pred_check
      %p1694 = pneg %p1693
    $region70: #{net_forward.1} parent=5 // pred_check_branch
      %1696 = sbr.rel (%p1694) target = $region72
    $region71: #{net_forward.1} parent=5 // pred_region
      %s1697 = ssub.s32 %s13, 2
      // Predicated region
      $region73: #{net_forward.1} parent=71 // pred_check
        %p1698 = pneg %p208
      $region74: #{net_forward.1} parent=71 // pred_check_branch
        %1700 = sbr.rel (%p1698) target = $region76
      $region75: #{net_forward.1} parent=71 // pred_region
        %s1701 = smul.u32 %s24, %s25
        %s1702 = smul.u32 32, %s1701
        %p1703 = scmp.lt.s32.totalorder %s1702, 63
        %s1704 = scalar_select %p1703, %s1702, 63
        %s1705 = smul.addr %s1704, 8
        %s1706 = scalar_lea.vmem %s7, %s1705
      $region76: #{net_forward.1} parent=71 // pred_fallthru
        _
    $region72: #{net_forward.1} parent=5 // pred_fallthru
      _
  $region6: #{net_forward.1} parent=0 // loop_footer
    %s17 = sadd.s32 1, %s13
  $region7: #{net_forward.1} parent=0 // loop_footer_branch
    %12 = sbr.rel target = $region3
  $region8: #{net_forward.1} parent=0 // loop_exit
    _

</llo_original>
